<compile_context>
chip_gen: v6e
topology: v6e:2x2x1
jax: 0.10.0
libtpu: 0.0.40
codegen_flags: <defaults>
</compile_context>

<pallas_src>
import numpy as np

import jax
import jax.numpy as jnp
from jax.experimental import pallas as pl
from jax.experimental.pallas import tpu as pltpu

# TODO(synk): the reference Normalization class is not provided; standard
# MNIST mean/sigma normalization is assumed.
MNIST_MEAN = 0.1307
MNIST_SIGMA = 0.3081

_LANE = 128


def _round_up(x, m):
    return ((x + m - 1) // m) * m


def _largest_tile(dim, cap):
    """Largest multiple-of-128 tile <= cap that divides dim (dim % 128 == 0)."""
    for c in (512, 384, 256, 128):
        if c <= cap and dim % c == 0:
            return c
    return 128


def _vmem_limit(est_bytes):
    """Explicit scoped-VMEM budget sized to the chosen blocks (safe on all chips)."""
    return int(min(30 * 2**20, max(16 * 2**20, 2 * est_bytes)))


# ----------------------------- Pallas kernels --------------------------------
def _interval_matmul_kernel(clb_ref, cub_ref, prev_ref, lb_ref, ub_ref):
    """One (tm, tn) output block of both DeepPoly bounds.

    Grid = (M, N, K, half).  half = 0 streams prev_lb tiles, half = 1 streams
    prev_ub tiles (prev is stored pre-stacked as (2, Kp, Np)).  The relu split
    of the current bounds is done in-kernel on the VPU:
        relu(x) = (x + |x|) / 2 ,   -relu(-x) = (x - |x|) / 2      (exact f32)
    Both bounds are produced with a single MXU matmul per block by stacking
    the lb-LHS and ub-LHS along M.  The f32 output blocks stay resident in
    VMEM across the two reduction axes and act as the accumulators.
    """
    k = pl.program_id(2)
    h = pl.program_id(3)                      # 0 -> prev_lb half, 1 -> prev_ub half

    @pl.when(jnp.logical_and(k == 0, h == 0))
    def _init():
        lb_ref[...] = jnp.zeros_like(lb_ref)
        ub_ref[...] = jnp.zeros_like(ub_ref)

    s = 1.0 - 2.0 * h.astype(jnp.float32)     # +1 on the lb half, -1 on the ub half
    clb = clb_ref[...]
    cub = cub_ref[...]
    lb_lhs = 0.5 * (clb + s * jnp.abs(clb))   # relu(clb)    /  -relu(-clb)
    ub_lhs = 0.5 * (cub - s * jnp.abs(cub))   # -relu(-cub)  /   relu(cub)

    lhs = jnp.concatenate([lb_lhs, ub_lhs], axis=0)        # (2*tm, tk)
    r = jnp.dot(lhs, prev_ref[...], preferred_element_type=jnp.float32)
    tm = clb.shape[0]
    lb_ref[...] += r[:tm]
    ub_ref[...] += r[tm:]


def _interval_matmul(cur_lb, cur_ub, prev_stack):
    """Tiled interval matmul: returns (new_lb, new_ub), each (Mp, Np) f32.

    cur_lb/cur_ub : (Mp, Kp) zero-padded current relative bounds.
    prev_stack    : (2, Kp, Np) pre-padded [prev_lb; bias row] / [prev_ub; bias row].
    """
    mp, kp = cur_lb.shape
    two, kps, np_ = prev_stack.shape
    assert two == 2 and kps == kp and cur_ub.shape == (mp, kp)

    # Maximize tm: a single M tile (prev streams from HBM exactly once) when
    # mp <= 512, otherwise full-height 256 tiles (mp is a multiple of 256 then).
    tm = mp if mp <= 512 else 256
    tk = _largest_tile(kp, 512)
    tn = _largest_tile(np_, 512)
    # v7x megacore: keep at least two output tiles along a "parallel" axis.
    if (mp // tm) * (np_ // tn) < 2:
        if np_ >= 2 * _LANE:
            tn = _largest_tile(np_, np_ // 2)
        elif mp >= 2 * _LANE:
            tm = _largest_tile(mp, mp // 2)

    grid = (mp // tm, np_ // tn, kp // tk, 2)

    est = 4 * (2 * 2 * tm * tk        # clb, cub double-buffered
               + 2 * tk * tn          # prev double-buffered
               + 2 * 2 * tm * tn      # lb, ub accumulators
               + 2 * 2 * tm * tk      # relu-split + concat temporaries
               + 2 * tm * tn)         # dot result temporary

    lb, ub = pl.pallas_call(
        _interval_matmul_kernel,
        out_shape=(jax.ShapeDtypeStruct((mp, np_), jnp.float32),
                   jax.ShapeDtypeStruct((mp, np_), jnp.float32)),
        grid=grid,
        in_specs=[
            pl.BlockSpec((tm, tk), lambda m, n, k, h: (m, k)),
            pl.BlockSpec((tm, tk), lambda m, n, k, h: (m, k)),
            pl.BlockSpec((None, tk, tn), lambda m, n, k, h: (h, k, n)),
        ],
        out_specs=(
            pl.BlockSpec((tm, tn), lambda m, n, k, h: (m, n)),
            pl.BlockSpec((tm, tn), lambda m, n, k, h: (m, n)),
        ),
        compiler_params=pltpu.CompilerParams(
            dimension_semantics=("parallel", "parallel", "arbitrary", "arbitrary"),
            vmem_limit_bytes=_vmem_limit(est)),
    )(cur_lb, cur_ub, prev_stack)
    return lb, ub


def _input_interval_kernel(clb_ref, cub_ref, plb_ref, pub_ref, lb_ref, ub_ref):
    """Final step against the (n0, 1) input interval: a VPU row-reduction.

    plb/pub are (1, tk) row slices of the padded input interval (bias entry
    included), broadcast over the sublanes of the (tm, tk) current blocks.
    Avoids a 128-padded lane-sparse GEMV through the MXU.
    """
    @pl.when(pl.program_id(1) == 0)
    def _init():
        lb_ref[...] = jnp.zeros_like(lb_ref)
        ub_ref[...] = jnp.zeros_like(ub_ref)

    clb = clb_ref[...]
    cub = cub_ref[...]
    plb = plb_ref[...]
    pub = pub_ref[...]
    aclb = jnp.abs(clb)
    acub = jnp.abs(cub)
    # relu(x)*p_lb + (-relu(-x))*p_ub  summed over lanes (and k blocks).
    lb_terms = 0.5 * ((clb + aclb) * plb + (clb - aclb) * pub)
    ub_terms = 0.5 * ((cub + acub) * pub + (cub - acub) * plb)
    lb_ref[...] += jnp.sum(lb_terms, axis=1, keepdims=True)
    ub_ref[...] += jnp.sum(ub_terms, axis=1, keepdims=True)


def _input_interval_matvec(cur_lb, cur_ub, in_lb_row, in_ub_row):
    mp, kp = cur_lb.shape
    assert in_lb_row.shape == (1, kp) and in_ub_row.shape == (1, kp)
    tm = _largest_tile(mp, 512)
    tk = _largest_tile(kp, 512)
    grid = (mp // tm, kp // tk)
    est = 4 * (2 * 2 * tm * tk + 4 * tk + 4 * tm + 4 * tm * tk)
    lb, ub = pl.pallas_call(
        _input_interval_kernel,
        out_shape=(jax.ShapeDtypeStruct((mp, 1), jnp.float32),
                   jax.ShapeDtypeStruct((mp, 1), jnp.float32)),
        grid=grid,
        in_specs=[
            pl.BlockSpec((tm, tk), lambda m, k: (m, k)),
            pl.BlockSpec((tm, tk), lambda m, k: (m, k)),
            pl.BlockSpec((1, tk), lambda m, k: (0, k)),
            pl.BlockSpec((1, tk), lambda m, k: (0, k)),
        ],
        out_specs=(
            pl.BlockSpec((tm, 1), lambda m, k: (m, 0)),
            pl.BlockSpec((tm, 1), lambda m, k: (m, 0)),
        ),
        compiler_params=pltpu.CompilerParams(
            dimension_semantics=("parallel", "arbitrary"),
            vmem_limit_bytes=_vmem_limit(est)),
    )(cur_lb, cur_ub, in_lb_row, in_ub_row)
    return lb, ub


# --------------------------- jitted backsub chain ----------------------------
@jax.jit
def _backsub_chain(cur_lb, cur_ub, in_lb_row, in_ub_row, *prev_stacks):
    """Full backsubstitution chain under one jit.

    cur_lb/cur_ub : padded (Mp, Cp) rel-bounds of the last layer.
    prev_stacks   : pre-padded (2, Kp_i, Np_i) stacks for layers L-1 ... 1.
    in_*_row      : (1, Kp0) padded input interval rows (bias entry included).
    Returns padded absolute bounds, each (Mp, 1) f32.
    """
    for stack in prev_stacks:
        assert stack.shape[1] == cur_lb.shape[1]
        cur_lb, cur_ub = _interval_matmul(cur_lb, cur_ub, stack)
    assert in_lb_row.shape[1] == cur_lb.shape[1]
    return _input_interval_matvec(cur_lb, cur_ub, in_lb_row, in_ub_row)


# ---------------------- pre-padded rel-bound preparation ---------------------
def _prepare_rel_bound(lb_mat, ub_mat):
    """One-time padding/stacking of a layer's rel_bound (done off the hot path).

    Returns both the "current" form (row/col zero-padded) and the "previous"
    form (bias row appended, rows padded to round_up(out+1, 128), lb/ub stacked
    into one (2, Kp, Np) array).  The paddings are chosen so consecutive steps
    line up with no per-step pad / slice / concat inside the jitted chain.
    """
    lb_mat = jnp.asarray(lb_mat, jnp.float32)
    ub_mat = jnp.asarray(ub_mat, jnp.float32)
    m, cols = lb_mat.shape
    # Full-height MXU tiles: pad M to 128 when a single <=512 tile covers it,
    # otherwise to 256 (so tm never degrades below 256 on v6e/v7x).
    mp = _round_up(m, _LANE) if m <= 512 else _round_up(m, 256)
    cp = _round_up(cols, _LANE)

    cur_lb = jnp.pad(lb_mat, ((0, mp - m), (0, cp - cols)))
    cur_ub = jnp.pad(ub_mat, ((0, mp - m), (0, cp - cols)))

    kp = _round_up(m + 1, _LANE)
    bias_row = jnp.zeros((1, cols), jnp.float32).at[0, cols - 1].set(1.0)
    plb = jnp.pad(jnp.concatenate([lb_mat, bias_row], axis=0),
                  ((0, kp - (m + 1)), (0, cp - cols)))
    pub = jnp.pad(jnp.concatenate([ub_mat, bias_row], axis=0),
                  ((0, kp - (m + 1)), (0, cp - cols)))
    prev_stack = jnp.stack([plb, pub], axis=0)            # (2, Kp, Np)

    return {"kind": "layer", "cur_lb": cur_lb, "cur_ub": cur_ub,
            "prev": prev_stack, "out": m, "cols": cols}


# ------------------------------ DP_object ------------------------------------
class Normalization:
    """Stand-in for the reference Normalization module (constants assumed)."""

    def __init__(self, device="tpu", dataset="mnist"):
        if dataset == "mnist":
            self.mean, self.sigma = MNIST_MEAN, MNIST_SIGMA
        else:
            self.mean, self.sigma = 0.0, 1.0

    def forward(self, x):
        return (x - self.mean) / self.sigma


class DPObject:
    """JAX port of the reference DP_object (clamp -> normalize -> flatten)."""

    def __init__(self, inputs, eps, dataset="mnist"):
        lb = jnp.clip(inputs - eps, 0.0, 1.0)
        ub = jnp.clip(inputs + eps, 0.0, 1.0)
        norm = Normalization(device="tpu", dataset=dataset)
        lb = norm.forward(lb)
        ub = norm.forward(ub)
        lb = lb.reshape(inputs.shape[0], -1)              # nn.Flatten
        ub = ub.reshape(inputs.shape[0], -1)
        lb = lb.reshape(-1, 1).astype(jnp.float32)
        ub = ub.reshape(-1, 1).astype(jnp.float32)
        self.rel_bounds = [(lb, ub)]
        self.abs_bounds = [(lb, ub)]

        # Pre-padded input interval rows (bias entry 1.0 included), built once.
        n0 = lb.shape[0]
        kp0 = _round_up(n0 + 1, _LANE)
        lb_row = (jnp.zeros((1, kp0), jnp.float32)
                  .at[0, :n0].set(lb[:, 0]).at[0, n0].set(1.0))
        ub_row = (jnp.zeros((1, kp0), jnp.float32)
                  .at[0, :n0].set(ub[:, 0]).at[0, n0].set(1.0))
        self._prepared = [{"kind": "input", "lb_row": lb_row,
                           "ub_row": ub_row, "n": n0}]

    def append_relbound(self, rel_bound, prepared=None):
        self.rel_bounds.append(rel_bound)
        if prepared is None:
            prepared = _prepare_rel_bound(rel_bound[0], rel_bound[1])
        self._prepared.append(prepared)

    def backsub(self):
        rel_bounds = self.rel_bounds
        if len(rel_bounds) == 1:
            return rel_bounds[0]
        last = self._prepared[-1]
        inp = self._prepared[0]
        stacks = [self._prepared[i]["prev"]
                  for i in range(len(self._prepared) - 2, 0, -1)]
        lb_p, ub_p = _backsub_chain(last["cur_lb"], last["cur_ub"],
                                    inp["lb_row"], inp["ub_row"], *stacks)
        m = last["out"]
        self.abs_bounds.append((lb_p[:m], ub_p[:m]))


# ------------------------------- DeepPConv -----------------------------------
class DeepPConv:
    """JAX port of the reference DeepPConv.

    Instead of an nn.Conv2d instance, takes explicit weight (O, I, k, k),
    bias (O,) or None, stride, padding and the flattened in_features count.
    The conv-as-matrix construction is one-time host-side numpy (not a kernel)
    and mirrors the reference conv2d_matrix() exactly.  The padded / stacked
    forms used by backsub are also built once here (off the hot path).
    """

    def __init__(self, weight, bias, stride, padding, in_features):
        weight = np.asarray(weight, dtype=np.float32)
        self.padding = int(padding)
        self.stride = int(stride)
        self.kernel_size = int(weight.shape[2])
        self.in_features = int(in_features)
        self.in_channels = int(weight.shape[1])
        self.out_channels = int(weight.shape[0])
        self.in_height = int(np.sqrt(self.in_features / self.in_channels))
        self.in_width = int(np.sqrt(self.in_features / self.in_channels))
        self.out_height = int(
            (self.in_height + 2 * self.padding - self.kernel_size)
            / self.stride + 1)
        self.out_width = int(
            (self.in_width + 2 * self.padding - self.kernel_size)
            / self.stride + 1)
        self.out_features = self.out_channels * self.out_height * self.out_width
        if bias is None:
            bias = np.zeros((self.out_channels,), dtype=np.float32)
        self._np_weight = weight
        self._np_bias = np.asarray(bias, dtype=np.float32)

        self.matrix = jnp.asarray(self.conv2d_matrix())
        self.weight = self.matrix[:, :-1]
        self.bias = self.matrix[:, -1]
        self.rel_bound = (self.matrix, self.matrix)
        # One-time padded / stacked forms (perf: no per-backsub-step jnp.pad).
        self.rel_bound_prepared = _prepare_rel_bound(self.matrix, self.matrix)

    def conv2d_matrix(self):
        w, b = self._np_weight, self._np_bias
        p, s, k = self.padding, self.stride, self.kernel_size
        in_w_pad = self.in_width + 2 * p
        in_h_pad = self.in_height + 2 * p
        sp_pad = in_h_pad * in_w_pad
        out_h, out_w = self.out_height, self.out_width

        results = np.zeros(
            (out_h * out_w * self.out_channels, sp_pad * self.in_channels),
            dtype=np.float32)
        fill_len = (self.in_channels - 1) * sp_pad + (k - 1) * in_w_pad + k
        fillers = np.zeros((self.out_channels, fill_len), dtype=np.float32)
        for oc in range(self.out_channels):
            for ic in range(self.in_channels):
                for kr in range(k):
                    start = ic * sp_pad + kr * in_w_pad
                    fillers[oc, start:start + k] = w[oc, ic, kr]
        for oc in range(self.out_channels):
            for oh in range(out_h):
                for ow in range(out_w):
                    row_off = oh * s * in_w_pad + ow * s
                    neuron = oc * out_h * out_w + oh * out_w + ow
                    results[neuron, row_off:row_off + fill_len] = fillers[oc]

        duplicates = []
        for ic in range(self.in_channels):
            for ih in range(in_h_pad):
                for iw in range(in_w_pad):
                    if iw < p or iw >= p + self.in_width:
                        duplicates.append(ic * sp_pad + ih * in_w_pad + iw)
                if ih < p or ih >= p + self.in_height:
                    start = ic * sp_pad + ih * in_w_pad
                    duplicates += list(range(start, start + in_w_pad))
        if duplicates:
            duplicates = np.unique(np.array(duplicates, dtype=np.int64))
            results = np.delete(results, duplicates, axis=1)

        bias_col = np.repeat(b, out_w * out_h).reshape(-1, 1)
        return np.concatenate([results, bias_col], axis=1).astype(np.float32)

    def forward(self, x: DPObject):
        x.append_relbound(self.rel_bound, prepared=self.rel_bound_prepared)
        return x


# ---------------------------- pure-JAX reference -----------------------------
def _ref_backsub(rel_bounds):
    hp = jax.lax.Precision.HIGHEST
    current_lb, current_ub = rel_bounds[-1]
    for i in range(len(rel_bounds) - 1, 0, -1):
        prev_lb, prev_ub = rel_bounds[i - 1]
        bias_row = jnp.zeros((1, prev_lb.shape[-1]), dtype=jnp.float32)
        bias_row = bias_row.at[0, -1].set(1.0)
        prev_lb = jnp.concatenate((prev_lb, bias_row), axis=0)
        prev_ub = jnp.concatenate((prev_ub, bias_row), axis=0)
        wp, wn = jnp.maximum(current_lb, 0.0), jnp.maximum(-current_lb, 0.0)
        new_lb = (jnp.matmul(wp, prev_lb, precision=hp)
                  - jnp.matmul(wn, prev_ub, precision=hp))
        wp, wn = jnp.maximum(current_ub, 0.0), jnp.maximum(-current_ub, 0.0)
        new_ub = (jnp.matmul(wp, prev_ub, precision=hp)
                  - jnp.matmul(wn, prev_lb, precision=hp))
        current_lb, current_ub = new_lb, new_ub
    return current_lb, current_ub


def _conv_forward_ref(x_nchw, w, b, stride, padding):
    y = jax.lax.conv_general_dilated(
        x_nchw, w, window_strides=(stride, stride),
        padding=[(padding, padding), (padding, padding)],
        dimension_numbers=("NCHW", "OIHW", "NCHW"),
        precision=jax.lax.Precision.HIGHEST)
    return y + b.reshape(1, -1, 1, 1)


if __name__ == "__main__":
    key = jax.random.PRNGKey(0)
    k_img, k_w1, k_b1, k_w2, k_b2, k_x1, k_x2 = jax.random.split(key, 7)
    hp = jax.lax.Precision.HIGHEST

    # Small image (NCHW, batch 1 as DeepPoly assumes) and eps-ball.
    B, C, H, W = 1, 2, 8, 8
    img = jax.random.uniform(k_img, (B, C, H, W), dtype=jnp.float32)
    eps = 0.05

    # Two convolutions (2->4, k3 s1 p1) and (4->8, k3 s2 p1).
    w1 = 0.2 * jax.random.normal(k_w1, (4, 2, 3, 3), dtype=jnp.float32)
    b1 = 0.1 * jax.random.normal(k_b1, (4,), dtype=jnp.float32)
    w2 = 0.2 * jax.random.normal(k_w2, (8, 4, 3, 3), dtype=jnp.float32)
    b2 = 0.1 * jax.random.normal(k_b2, (8,), dtype=jnp.float32)

    conv1 = DeepPConv(w1, b1, stride=1, padding=1, in_features=C * H * W)
    conv2 = DeepPConv(w2, b2, stride=2, padding=1,
                      in_features=conv1.out_features)

    # Sanity check: the conv-as-matrix rel_bounds reproduce the real convs.
    xt1 = jax.random.normal(k_x1, (1, 2, 8, 8), dtype=jnp.float32)
    y1_mat = (jnp.matmul(conv1.matrix[:, :-1], xt1.reshape(-1, 1), precision=hp)
              + conv1.matrix[:, -1:])
    y1_ref = _conv_forward_ref(xt1, w1, b1, 1, 1).reshape(-1, 1)
    assert jnp.allclose(y1_mat, y1_ref, atol=1e-4, rtol=1e-4)
    xt2 = jax.random.normal(k_x2, (1, 4, 8, 8), dtype=jnp.float32)
    y2_mat = (jnp.matmul(conv2.matrix[:, :-1], xt2.reshape(-1, 1), precision=hp)
              + conv2.matrix[:, -1:])
    y2_ref = _conv_forward_ref(xt2, w2, b2, 2, 1).reshape(-1, 1)
    assert jnp.allclose(y2_mat, y2_ref, atol=1e-4, rtol=1e-4)

    # DP forward: append conv rel_bounds, then backsubstitute (Pallas kernels).
    dp = DPObject(img, eps, dataset="mnist")
    dp = conv1.forward(dp)
    dp.backsub()                      # 1-step chain: input-interval kernel
    lb1, ub1 = dp.abs_bounds[-1]

    dp = conv2.forward(dp)
    dp.backsub()                      # 2-step chain: matmul kernel + input kernel
    lb2, ub2 = dp.abs_bounds[-1]

    lb1, ub1, lb2, ub2 = jax.block_until_ready((lb1, ub1, lb2, ub2))

    # Pure-JAX reference of the identical backsubstitutions.
    ref_lb1, ref_ub1 = _ref_backsub([dp.rel_bounds[0], conv1.rel_bound])
    ref_lb2, ref_ub2 = _ref_backsub(
        [dp.rel_bounds[0], conv1.rel_bound, conv2.rel_bound])

    assert lb1.shape == (conv1.out_features, 1) and ub1.shape == lb1.shape
    assert lb2.shape == (conv2.out_features, 1) and ub2.shape == lb2.shape
    assert jnp.allclose(lb1, ref_lb1, atol=1e-4, rtol=1e-4)
    assert jnp.allclose(ub1, ref_ub1, atol=1e-4, rtol=1e-4)
    assert jnp.allclose(lb2, ref_lb2, atol=1e-4, rtol=1e-4)
    assert jnp.allclose(ub2, ref_ub2, atol=1e-4, rtol=1e-4)
    # Soundness sanity: lower bounds never exceed upper bounds.
    assert bool(jnp.all(lb2 <= ub2 + 1e-5))

    print("KERNEL_OK")
</pallas_src>

<mosaic_0001>
module attributes {stable_mosaic.version = 11 : i64} {
  func.func @_input_interval_kernel(%arg0: i32, %arg1: i32, %arg2: memref<256x256xf32, #tpu.memory_space<vmem>>, %arg3: memref<256x256xf32, #tpu.memory_space<vmem>>, %arg4: memref<1x256xf32, #tpu.memory_space<vmem>>, %arg5: memref<1x256xf32, #tpu.memory_space<vmem>>, %arg6: memref<256x1xf32, #tpu.memory_space<vmem>>, %arg7: memref<256x1xf32, #tpu.memory_space<vmem>>) attributes {dimension_semantics = [#tpu.dimension_semantics<parallel>, #tpu.dimension_semantics<arbitrary>], iteration_bounds = array<i64: 1, 1>, scalar_prefetch = 0 : i64, scratch_operands = 0 : i64, tpu.core_type = #tpu.core_type<tc>, window_params = [{transform_indices = @transform_0, window_bounds = array<i64: 256, 256>}, {transform_indices = @transform_1, window_bounds = array<i64: 256, 256>}, {transform_indices = @transform_2, window_bounds = array<i64: 1, 256>}, {transform_indices = @transform_3, window_bounds = array<i64: 1, 256>}, {transform_indices = @transform_4, window_bounds = array<i64: 256, 1>}, {transform_indices = @transform_5, window_bounds = array<i64: 256, 1>}]} {
    %c0_i32 = arith.constant 0 : i32
    %0 = arith.cmpi eq, %arg1, %c0_i32 : i32
    %1 = arith.extui %0 : i1 to i32
    %c0_i32_0 = arith.constant 0 : i32
    %2 = arith.cmpi ne, %1, %c0_i32_0 : i32
    scf.if %2 {
      %cst_19 = arith.constant 0.000000e+00 : f32
      %37 = vector.broadcast %cst_19 : f32 to vector<256x1xf32>
      %c0_20 = arith.constant 0 : index
      %c0_21 = arith.constant 0 : index
      %38 = vector.load %arg6[%c0_20, %c0_21] : memref<256x1xf32, #tpu.memory_space<vmem>>, vector<256x1xf32>
      tpu.vector_store %arg6[%c0_20, %c0_21], %37 {strides = array<i32>} : memref<256x1xf32, #tpu.memory_space<vmem>>, vector<256x1xf32>,
      %cst_22 = arith.constant 0.000000e+00 : f32
      %39 = vector.broadcast %cst_22 : f32 to vector<256x1xf32>
      %c0_23 = arith.constant 0 : index
      %c0_24 = arith.constant 0 : index
      %40 = vector.load %arg7[%c0_23, %c0_24] : memref<256x1xf32, #tpu.memory_space<vmem>>, vector<256x1xf32>
      tpu.vector_store %arg7[%c0_23, %c0_24], %39 {strides = array<i32>} : memref<256x1xf32, #tpu.memory_space<vmem>>, vector<256x1xf32>,
    } else {
    }
    %c0 = arith.constant 0 : index
    %c0_1 = arith.constant 0 : index
    %3 = vector.load %arg2[%c0, %c0_1] : memref<256x256xf32, #tpu.memory_space<vmem>>, vector<256x256xf32>
    %c0_2 = arith.constant 0 : index
    %c0_3 = arith.constant 0 : index
    %4 = vector.load %arg3[%c0_2, %c0_3] : memref<256x256xf32, #tpu.memory_space<vmem>>, vector<256x256xf32>
    %c0_4 = arith.constant 0 : index
    %c0_5 = arith.constant 0 : index
    %5 = vector.load %arg4[%c0_4, %c0_5] : memref<1x256xf32, #tpu.memory_space<vmem>>, vector<1x256xf32>
    %c0_6 = arith.constant 0 : index
    %c0_7 = arith.constant 0 : index
    %6 = vector.load %arg5[%c0_6, %c0_7] : memref<1x256xf32, #tpu.memory_space<vmem>>, vector<1x256xf32>
    %7 = math.absf %3 : vector<256x256xf32>
    %8 = math.absf %4 : vector<256x256xf32>
    %9 = arith.addf %3, %7 : vector<256x256xf32>
    %10 = vector.broadcast %5 : vector<1x256xf32> to vector<256x256xf32>
    %11 = arith.mulf %9, %10 : vector<256x256xf32>
    %12 = arith.subf %3, %7 : vector<256x256xf32>
    %13 = vector.broadcast %6 : vector<1x256xf32> to vector<256x256xf32>
    %14 = arith.mulf %12, %13 : vector<256x256xf32>
    %15 = arith.addf %11, %14 : vector<256x256xf32>
    %cst = arith.constant 5.000000e-01 : f32
    %16 = vector.broadcast %cst : f32 to vector<256x256xf32>
    %17 = arith.mulf %16, %15 : vector<256x256xf32>
    %18 = arith.addf %4, %8 : vector<256x256xf32>
    %19 = vector.broadcast %6 : vector<1x256xf32> to vector<256x256xf32>
    %20 = arith.mulf %18, %19 : vector<256x256xf32>
    %21 = arith.subf %4, %8 : vector<256x256xf32>
    %22 = vector.broadcast %5 : vector<1x256xf32> to vector<256x256xf32>
    %23 = arith.mulf %21, %22 : vector<256x256xf32>
    %24 = arith.addf %20, %23 : vector<256x256xf32>
    %cst_8 = arith.constant 5.000000e-01 : f32
    %25 = vector.broadcast %cst_8 : f32 to vector<256x256xf32>
    %26 = arith.mulf %25, %24 : vector<256x256xf32>
    %c0_9 = arith.constant 0 : index
    %c0_10 = arith.constant 0 : index
    %27 = vector.load %arg6[%c0_9, %c0_10] : memref<256x1xf32, #tpu.memory_space<vmem>>, vector<256x1xf32>
    %cst_11 = arith.constant dense<0.000000e+00> : vector<256xf32>
    %28 = vector.multi_reduction <add>, %17, %cst_11 [1] : vector<256x256xf32> to vector<256xf32>
    %29 = vector.shape_cast %28 : vector<256xf32> to vector<256x1xf32>
    %30 = arith.addf %27, %29 : vector<256x1xf32>
    %c0_12 = arith.constant 0 : index
    %c0_13 = arith.constant 0 : index
    %31 = vector.load %arg6[%c0_12, %c0_13] : memref<256x1xf32, #tpu.memory_space<vmem>>, vector<256x1xf32>
    tpu.vector_store %arg6[%c0_12, %c0_13], %30 {strides = array<i32>} : memref<256x1xf32, #tpu.memory_space<vmem>>, vector<256x1xf32>,
    %c0_14 = arith.constant 0 : index
    %c0_15 = arith.constant 0 : index
    %32 = vector.load %arg7[%c0_14, %c0_15] : memref<256x1xf32, #tpu.memory_space<vmem>>, vector<256x1xf32>
    %cst_16 = arith.constant dense<0.000000e+00> : vector<256xf32>
    %33 = vector.multi_reduction <add>, %26, %cst_16 [1] : vector<256x256xf32> to vector<256xf32>
    %34 = vector.shape_cast %33 : vector<256xf32> to vector<256x1xf32>
    %35 = arith.addf %32, %34 : vector<256x1xf32>
    %c0_17 = arith.constant 0 : index
    %c0_18 = arith.constant 0 : index
    %36 = vector.load %arg7[%c0_17, %c0_18] : memref<256x1xf32, #tpu.memory_space<vmem>>, vector<256x1xf32>
    tpu.vector_store %arg7[%c0_17, %c0_18], %35 {strides = array<i32>} : memref<256x1xf32, #tpu.memory_space<vmem>>, vector<256x1xf32>,
    return
  }
  func.func @transform_0(%arg0: i32, %arg1: i32) -> (i32, i32) {
    %c0_i32 = arith.constant 0 : i32
    return %arg0, %arg1 : i32, i32
  }
  func.func @transform_1(%arg0: i32, %arg1: i32) -> (i32, i32) {
    %c0_i32 = arith.constant 0 : i32
    return %arg0, %arg1 : i32, i32
  }
  func.func @transform_2(%arg0: i32, %arg1: i32) -> (i32, i32) {
    %c0_i32 = arith.constant 0 : i32
    %c0_i32_0 = arith.constant 0 : i32
    return %c0_i32, %arg1 : i32, i32
  }
  func.func @transform_3(%arg0: i32, %arg1: i32) -> (i32, i32) {
    %c0_i32 = arith.constant 0 : i32
    %c0_i32_0 = arith.constant 0 : i32
    return %c0_i32, %arg1 : i32, i32
  }
  func.func @transform_4(%arg0: i32, %arg1: i32) -> (i32, i32) {
    %c0_i32 = arith.constant 0 : i32
    %c0_i32_0 = arith.constant 0 : i32
    return %arg0, %c0_i32 : i32, i32
  }
  func.func @transform_5(%arg0: i32, %arg1: i32) -> (i32, i32) {
    %c0_i32 = arith.constant 0 : i32
    %c0_i32_0 = arith.constant 0 : i32
    return %arg0, %c0_i32 : i32, i32
  }
}

</mosaic_0001>

<llo_original>
// kernel: _backsub_chain.1
$region0: #{_backsub_chain.1}
  #allocation0 [shape = 'u32[]', space=smem, size = 0x4, offset = 0x4, fixed_abs, tag = 'smem constant byte address 0x4 - core index']
  #allocation1 [shape = 'u32[144,128]{1,0:T(1,128)}', space=vmem, size = 0x12000, scoped, tag = 'internal scratch']
  %s0 = inlined_call_operand.hbm [shape: f32[256,256], index: 0, kind: input, shape index: {}]
  %s1 = inlined_call_operand.hbm [shape: f32[256,256], index: 1, kind: input, shape index: {}]
  %s2 = inlined_call_operand.vmem [shape: f32[1,256], index: 2, kind: input, shape index: {}]
  %s3 = inlined_call_operand.vmem [shape: f32[1,256], index: 3, kind: input, shape index: {}]
  %s4 = inlined_call_operand.vmem [shape: f32[256,1], index: 4, kind: output, shape index: {0}]
  %s5 = inlined_call_operand.vmem [shape: f32[256,1], index: 5, kind: output, shape index: {1}]
  %6 = xla_tuple %s4, %s5
  %s7 = sld [smem:[#allocation0]]
  $region46: #{_backsub_chain.1} parent=0
    _
  %s9 = ssub.s32 1, %s7
  %s10 = scalar_select 0, %s9, %s7
  $region1: #{_backsub_chain.1} parent=0
    #allocation2 [shape = 'u8[262144]{0}', space=vmem, size = 0x40000, scoped, tag = 'input window, operand 0, single buffered']
    #allocation3 [shape = 's32[1]{0}', space=sflag, size = 0x4, scoped, tag = 'scoped memory for _backsub_chain.1']
    #allocation4 [shape = 'u8[262144]{0}', space=vmem, size = 0x40000, scoped, tag = 'input window, operand 1, single buffered']
    #allocation5 [shape = 's32[1]{0}', space=sflag, size = 0x4, scoped, tag = 'scoped memory for _backsub_chain.1']
    %11 = vsyncpa [#allocation3], 0
    %12 = vsyncpa [#allocation5], 0
    // Predicated region
    $region2: #{_backsub_chain.1} parent=1 // pred_check
      _
    $region3: #{_backsub_chain.1} parent=1 // pred_check_branch
      %14 = sbr.rel (0) target = $region5
    $region4: #{_backsub_chain.1} parent=1 // pred_region
      %s16 = ssub.s32 8192, 8192
      %17 = vsyncadd [#allocation3], %s16
      %s18 = sshll.u32 [#allocation2], 4
      %s19 = int_to_ptr.vmem [resolvable:$true] %s18
      %24 = dma.hbm_to_vmem [thread:$0]  %s0, 8192, %s19, [#allocation3], 256, 256, 16
    $region5: #{_backsub_chain.1} parent=1 // pred_fallthru
      _
    // Predicated region
    $region6: #{_backsub_chain.1} parent=1 // pred_check
      _
    $region7: #{_backsub_chain.1} parent=1 // pred_check_branch
      %26 = sbr.rel (0) target = $region9
    $region8: #{_backsub_chain.1} parent=1 // pred_region
      %s28 = ssub.s32 8192, 8192
      %29 = vsyncadd [#allocation5], %s28
      %s30 = sshll.u32 [#allocation4], 4
      %s31 = int_to_ptr.vmem [resolvable:$true] %s30
      %36 = dma.hbm_to_vmem [thread:$0]  %s1, 8192, %s31, [#allocation5], 256, 256, 16
    $region9: #{_backsub_chain.1} parent=1 // pred_fallthru
      _
    // Predicated region
    $region10: #{_backsub_chain.1} parent=1 // pred_check
      _
    $region11: #{_backsub_chain.1} parent=1 // pred_check_branch
      %38 = sbr.rel (0) target = $region13
    $region12: #{_backsub_chain.1} parent=1 // pred_region
      _
    $region13: #{_backsub_chain.1} parent=1 // pred_fallthru
      _
    // Predicated region
    $region14: #{_backsub_chain.1} parent=1 // pred_check
      _
    $region15: #{_backsub_chain.1} parent=1 // pred_check_branch
      %40 = sbr.rel (0) target = $region17
    $region16: #{_backsub_chain.1} parent=1 // pred_region
      _
    $region17: #{_backsub_chain.1} parent=1 // pred_fallthru
      _
    // Predicated region
    $region18: #{_backsub_chain.1} parent=1 // pred_check
      _
    $region19: #{_backsub_chain.1} parent=1 // pred_check_branch
      %42 = sbr.rel (0) target = $region21
    $region20: #{_backsub_chain.1} parent=1 // pred_region
      %43 = dma.done [#allocation3], 8192
    $region21: #{_backsub_chain.1} parent=1 // pred_fallthru
      _
    // Predicated region
    $region22: #{_backsub_chain.1} parent=1 // pred_check
      _
    $region23: #{_backsub_chain.1} parent=1 // pred_check_branch
      %45 = sbr.rel (0) target = $region25
    $region24: #{_backsub_chain.1} parent=1 // pred_region
      %46 = dma.done [#allocation5], 8192
    $region25: #{_backsub_chain.1} parent=1 // pred_fallthru
      _
    %p47 = scmp.eq.s32.totalorder 0, 0
    // Predicated region
    $region26: #{_backsub_chain.1} parent=1 // pred_check
      %p48 = pneg %p47
    $region27: #{_backsub_chain.1} parent=1 // pred_check_branch
      %50 = sbr.rel (%p48) target = $region29
    $region28: #{_backsub_chain.1} parent=1 // pred_region
      %vm51 = vcmask 7168
      %52 = vst.msk [vmem:[%s4] sm:$0xff] %vm51, 0.0
      %53 = vst.msk [vmem:[%s4 + $0x8] sm:$0xff] %vm51, 0.0
      %54 = vst.msk [vmem:[%s4 + $0x10] sm:$0xff] %vm51, 0.0
      %55 = vst.msk [vmem:[%s4 + $0x18] sm:$0xff] %vm51, 0.0
      %56 = vst.msk [vmem:[%s4 + $0x20] sm:$0xff] %vm51, 0.0
      %57 = vst.msk [vmem:[%s4 + $0x28] sm:$0xff] %vm51, 0.0
      %58 = vst.msk [vmem:[%s4 + $0x30] sm:$0xff] %vm51, 0.0
      %59 = vst.msk [vmem:[%s4 + $0x38] sm:$0xff] %vm51, 0.0
      %60 = vst.msk [vmem:[%s4 + $0x40] sm:$0xff] %vm51, 0.0
      %61 = vst.msk [vmem:[%s4 + $0x48] sm:$0xff] %vm51, 0.0
      %62 = vst.msk [vmem:[%s4 + $0x50] sm:$0xff] %vm51, 0.0
      %63 = vst.msk [vmem:[%s4 + $0x58] sm:$0xff] %vm51, 0.0
      %64 = vst.msk [vmem:[%s4 + $0x60] sm:$0xff] %vm51, 0.0
      %65 = vst.msk [vmem:[%s4 + $0x68] sm:$0xff] %vm51, 0.0
      %66 = vst.msk [vmem:[%s4 + $0x70] sm:$0xff] %vm51, 0.0
      %67 = vst.msk [vmem:[%s4 + $0x78] sm:$0xff] %vm51, 0.0
      %68 = vst.msk [vmem:[%s4 + $0x80] sm:$0xff] %vm51, 0.0
      %69 = vst.msk [vmem:[%s4 + $0x88] sm:$0xff] %vm51, 0.0
      %70 = vst.msk [vmem:[%s4 + $0x90] sm:$0xff] %vm51, 0.0
      %71 = vst.msk [vmem:[%s4 + $0x98] sm:$0xff] %vm51, 0.0
      %72 = vst.msk [vmem:[%s4 + $0xa0] sm:$0xff] %vm51, 0.0
      %73 = vst.msk [vmem:[%s4 + $0xa8] sm:$0xff] %vm51, 0.0
      %74 = vst.msk [vmem:[%s4 + $0xb0] sm:$0xff] %vm51, 0.0
      %75 = vst.msk [vmem:[%s4 + $0xb8] sm:$0xff] %vm51, 0.0
      %76 = vst.msk [vmem:[%s4 + $0xc0] sm:$0xff] %vm51, 0.0
      %77 = vst.msk [vmem:[%s4 + $0xc8] sm:$0xff] %vm51, 0.0
      %78 = vst.msk [vmem:[%s4 + $0xd0] sm:$0xff] %vm51, 0.0
      %79 = vst.msk [vmem:[%s4 + $0xd8] sm:$0xff] %vm51, 0.0
      %80 = vst.msk [vmem:[%s4 + $0xe0] sm:$0xff] %vm51, 0.0
      %81 = vst.msk [vmem:[%s4 + $0xe8] sm:$0xff] %vm51, 0.0
      %82 = vst.msk [vmem:[%s4 + $0xf0] sm:$0xff] %vm51, 0.0
      %83 = vst.msk [vmem:[%s4 + $0xf8] sm:$0xff] %vm51, 0.0
      %84 = vst.msk [vmem:[%s5] sm:$0xff] %vm51, 0.0
      %85 = vst.msk [vmem:[%s5 + $0x8] sm:$0xff] %vm51, 0.0
      %86 = vst.msk [vmem:[%s5 + $0x10] sm:$0xff] %vm51, 0.0
      %87 = vst.msk [vmem:[%s5 + $0x18] sm:$0xff] %vm51, 0.0
      %88 = vst.msk [vmem:[%s5 + $0x20] sm:$0xff] %vm51, 0.0
      %89 = vst.msk [vmem:[%s5 + $0x28] sm:$0xff] %vm51, 0.0
      %90 = vst.msk [vmem:[%s5 + $0x30] sm:$0xff] %vm51, 0.0
      %91 = vst.msk [vmem:[%s5 + $0x38] sm:$0xff] %vm51, 0.0
      %92 = vst.msk [vmem:[%s5 + $0x40] sm:$0xff] %vm51, 0.0
      %93 = vst.msk [vmem:[%s5 + $0x48] sm:$0xff] %vm51, 0.0
      %94 = vst.msk [vmem:[%s5 + $0x50] sm:$0xff] %vm51, 0.0
      %95 = vst.msk [vmem:[%s5 + $0x58] sm:$0xff] %vm51, 0.0
      %96 = vst.msk [vmem:[%s5 + $0x60] sm:$0xff] %vm51, 0.0
      %97 = vst.msk [vmem:[%s5 + $0x68] sm:$0xff] %vm51, 0.0
      %98 = vst.msk [vmem:[%s5 + $0x70] sm:$0xff] %vm51, 0.0
      %99 = vst.msk [vmem:[%s5 + $0x78] sm:$0xff] %vm51, 0.0
      %100 = vst.msk [vmem:[%s5 + $0x80] sm:$0xff] %vm51, 0.0
      %101 = vst.msk [vmem:[%s5 + $0x88] sm:$0xff] %vm51, 0.0
      %102 = vst.msk [vmem:[%s5 + $0x90] sm:$0xff] %vm51, 0.0
      %103 = vst.msk [vmem:[%s5 + $0x98] sm:$0xff] %vm51, 0.0
      %104 = vst.msk [vmem:[%s5 + $0xa0] sm:$0xff] %vm51, 0.0
      %105 = vst.msk [vmem:[%s5 + $0xa8] sm:$0xff] %vm51, 0.0
      %106 = vst.msk [vmem:[%s5 + $0xb0] sm:$0xff] %vm51, 0.0
      %107 = vst.msk [vmem:[%s5 + $0xb8] sm:$0xff] %vm51, 0.0
      %108 = vst.msk [vmem:[%s5 + $0xc0] sm:$0xff] %vm51, 0.0
      %109 = vst.msk [vmem:[%s5 + $0xc8] sm:$0xff] %vm51, 0.0
      %110 = vst.msk [vmem:[%s5 + $0xd0] sm:$0xff] %vm51, 0.0
      %111 = vst.msk [vmem:[%s5 + $0xd8] sm:$0xff] %vm51, 0.0
      %112 = vst.msk [vmem:[%s5 + $0xe0] sm:$0xff] %vm51, 0.0
      %113 = vst.msk [vmem:[%s5 + $0xe8] sm:$0xff] %vm51, 0.0
      %114 = vst.msk [vmem:[%s5 + $0xf0] sm:$0xff] %vm51, 0.0
      %115 = vst.msk [vmem:[%s5 + $0xf8] sm:$0xff] %vm51, 0.0
    $region29: #{_backsub_chain.1} parent=1 // pred_fallthru
      _
    %v116 = vld [vmem:[#allocation2] sm:$0xff]
    %v117 = vld [vmem:[#allocation2 + $0x8] sm:$0xff]
    %v118 = vld [vmem:[#allocation2 + $0x10] sm:$0xff]
    %v119 = vld [vmem:[#allocation2 + $0x18] sm:$0xff]
    %v120 = vld [vmem:[#allocation2 + $0x20] sm:$0xff]
    %v121 = vld [vmem:[#allocation2 + $0x28] sm:$0xff]
    %v122 = vld [vmem:[#allocation2 + $0x30] sm:$0xff]
    %v123 = vld [vmem:[#allocation2 + $0x38] sm:$0xff]
    %v124 = vld [vmem:[#allocation2 + $0x40] sm:$0xff]
    %v125 = vld [vmem:[#allocation2 + $0x48] sm:$0xff]
    %v126 = vld [vmem:[#allocation2 + $0x50] sm:$0xff]
    %v127 = vld [vmem:[#allocation2 + $0x58] sm:$0xff]
    %v128 = vld [vmem:[#allocation2 + $0x60] sm:$0xff]
    %v129 = vld [vmem:[#allocation2 + $0x68] sm:$0xff]
    %v130 = vld [vmem:[#allocation2 + $0x70] sm:$0xff]
    %v131 = vld [vmem:[#allocation2 + $0x78] sm:$0xff]
    %v132 = vld [vmem:[#allocation2 + $0x80] sm:$0xff]
    %v133 = vld [vmem:[#allocation2 + $0x88] sm:$0xff]
    %v134 = vld [vmem:[#allocation2 + $0x90] sm:$0xff]
    %v135 = vld [vmem:[#allocation2 + $0x98] sm:$0xff]
    %v136 = vld [vmem:[#allocation2 + $0xa0] sm:$0xff]
    %v137 = vld [vmem:[#allocation2 + $0xa8] sm:$0xff]
    %v138 = vld [vmem:[#allocation2 + $0xb0] sm:$0xff]
    %v139 = vld [vmem:[#allocation2 + $0xb8] sm:$0xff]
    %v140 = vld [vmem:[#allocation2 + $0xc0] sm:$0xff]
    %v141 = vld [vmem:[#allocation2 + $0xc8] sm:$0xff]
    %v142 = vld [vmem:[#allocation2 + $0xd0] sm:$0xff]
    %v143 = vld [vmem:[#allocation2 + $0xd8] sm:$0xff]
    %v144 = vld [vmem:[#allocation2 + $0xe0] sm:$0xff]
    %v145 = vld [vmem:[#allocation2 + $0xe8] sm:$0xff]
    %v146 = vld [vmem:[#allocation2 + $0xf0] sm:$0xff]
    %v147 = vld [vmem:[#allocation2 + $0xf8] sm:$0xff]
    %v148 = vld [vmem:[#allocation2 + $0x100] sm:$0xff]
    %v149 = vld [vmem:[#allocation2 + $0x108] sm:$0xff]
    %v150 = vld [vmem:[#allocation2 + $0x110] sm:$0xff]
    %v151 = vld [vmem:[#allocation2 + $0x118] sm:$0xff]
    %v152 = vld [vmem:[#allocation2 + $0x120] sm:$0xff]
    %v153 = vld [vmem:[#allocation2 + $0x128] sm:$0xff]
    %v154 = vld [vmem:[#allocation2 + $0x130] sm:$0xff]
    %v155 = vld [vmem:[#allocation2 + $0x138] sm:$0xff]
    %v156 = vld [vmem:[#allocation2 + $0x140] sm:$0xff]
    %v157 = vld [vmem:[#allocation2 + $0x148] sm:$0xff]
    %v158 = vld [vmem:[#allocation2 + $0x150] sm:$0xff]
    %v159 = vld [vmem:[#allocation2 + $0x158] sm:$0xff]
    %v160 = vld [vmem:[#allocation2 + $0x160] sm:$0xff]
    %v161 = vld [vmem:[#allocation2 + $0x168] sm:$0xff]
    %v162 = vld [vmem:[#allocation2 + $0x170] sm:$0xff]
    %v163 = vld [vmem:[#allocation2 + $0x178] sm:$0xff]
    %v164 = vld [vmem:[#allocation2 + $0x180] sm:$0xff]
    %v165 = vld [vmem:[#allocation2 + $0x188] sm:$0xff]
    %v166 = vld [vmem:[#allocation2 + $0x190] sm:$0xff]
    %v167 = vld [vmem:[#allocation2 + $0x198] sm:$0xff]
    %v168 = vld [vmem:[#allocation2 + $0x1a0] sm:$0xff]
    %v169 = vld [vmem:[#allocation2 + $0x1a8] sm:$0xff]
    %v170 = vld [vmem:[#allocation2 + $0x1b0] sm:$0xff]
    %v171 = vld [vmem:[#allocation2 + $0x1b8] sm:$0xff]
    %v172 = vld [vmem:[#allocation2 + $0x1c0] sm:$0xff]
    %v173 = vld [vmem:[#allocation2 + $0x1c8] sm:$0xff]
    %v174 = vld [vmem:[#allocation2 + $0x1d0] sm:$0xff]
    %v175 = vld [vmem:[#allocation2 + $0x1d8] sm:$0xff]
    %v176 = vld [vmem:[#allocation2 + $0x1e0] sm:$0xff]
    %v177 = vld [vmem:[#allocation2 + $0x1e8] sm:$0xff]
    %v178 = vld [vmem:[#allocation2 + $0x1f0] sm:$0xff]
    %v179 = vld [vmem:[#allocation2 + $0x1f8] sm:$0xff]
    %v180 = vld [vmem:[#allocation4] sm:$0xff]
    %v181 = vld [vmem:[#allocation4 + $0x8] sm:$0xff]
    %v182 = vld [vmem:[#allocation4 + $0x10] sm:$0xff]
    %v183 = vld [vmem:[#allocation4 + $0x18] sm:$0xff]
    %v184 = vld [vmem:[#allocation4 + $0x20] sm:$0xff]
    %v185 = vld [vmem:[#allocation4 + $0x28] sm:$0xff]
    %v186 = vld [vmem:[#allocation4 + $0x30] sm:$0xff]
    %v187 = vld [vmem:[#allocation4 + $0x38] sm:$0xff]
    %v188 = vld [vmem:[#allocation4 + $0x40] sm:$0xff]
    %v189 = vld [vmem:[#allocation4 + $0x48] sm:$0xff]
    %v190 = vld [vmem:[#allocation4 + $0x50] sm:$0xff]
    %v191 = vld [vmem:[#allocation4 + $0x58] sm:$0xff]
    %v192 = vld [vmem:[#allocation4 + $0x60] sm:$0xff]
    %v193 = vld [vmem:[#allocation4 + $0x68] sm:$0xff]
    %v194 = vld [vmem:[#allocation4 + $0x70] sm:$0xff]
    %v195 = vld [vmem:[#allocation4 + $0x78] sm:$0xff]
    %v196 = vld [vmem:[#allocation4 + $0x80] sm:$0xff]
    %v197 = vld [vmem:[#allocation4 + $0x88] sm:$0xff]
    %v198 = vld [vmem:[#allocation4 + $0x90] sm:$0xff]
    %v199 = vld [vmem:[#allocation4 + $0x98] sm:$0xff]
    %v200 = vld [vmem:[#allocation4 + $0xa0] sm:$0xff]
    %v201 = vld [vmem:[#allocation4 + $0xa8] sm:$0xff]
    %v202 = vld [vmem:[#allocation4 + $0xb0] sm:$0xff]
    %v203 = vld [vmem:[#allocation4 + $0xb8] sm:$0xff]
    %v204 = vld [vmem:[#allocation4 + $0xc0] sm:$0xff]
    %v205 = vld [vmem:[#allocation4 + $0xc8] sm:$0xff]
    %v206 = vld [vmem:[#allocation4 + $0xd0] sm:$0xff]
    %v207 = vld [vmem:[#allocation4 + $0xd8] sm:$0xff]
    %v208 = vld [vmem:[#allocation4 + $0xe0] sm:$0xff]
    %v209 = vld [vmem:[#allocation4 + $0xe8] sm:$0xff]
    %v210 = vld [vmem:[#allocation4 + $0xf0] sm:$0xff]
    %v211 = vld [vmem:[#allocation4 + $0xf8] sm:$0xff]
    %v212 = vld [vmem:[#allocation4 + $0x100] sm:$0xff]
    %v213 = vld [vmem:[#allocation4 + $0x108] sm:$0xff]
    %v214 = vld [vmem:[#allocation4 + $0x110] sm:$0xff]
    %v215 = vld [vmem:[#allocation4 + $0x118] sm:$0xff]
    %v216 = vld [vmem:[#allocation4 + $0x120] sm:$0xff]
    %v217 = vld [vmem:[#allocation4 + $0x128] sm:$0xff]
    %v218 = vld [vmem:[#allocation4 + $0x130] sm:$0xff]
    %v219 = vld [vmem:[#allocation4 + $0x138] sm:$0xff]
    %v220 = vld [vmem:[#allocation4 + $0x140] sm:$0xff]
    %v221 = vld [vmem:[#allocation4 + $0x148] sm:$0xff]
    %v222 = vld [vmem:[#allocation4 + $0x150] sm:$0xff]
    %v223 = vld [vmem:[#allocation4 + $0x158] sm:$0xff]
    %v224 = vld [vmem:[#allocation4 + $0x160] sm:$0xff]
    %v225 = vld [vmem:[#allocation4 + $0x168] sm:$0xff]
    %v226 = vld [vmem:[#allocation4 + $0x170] sm:$0xff]
    %v227 = vld [vmem:[#allocation4 + $0x178] sm:$0xff]
    %v228 = vld [vmem:[#allocation4 + $0x180] sm:$0xff]
    %v229 = vld [vmem:[#allocation4 + $0x188] sm:$0xff]
    %v230 = vld [vmem:[#allocation4 + $0x190] sm:$0xff]
    %v231 = vld [vmem:[#allocation4 + $0x198] sm:$0xff]
    %v232 = vld [vmem:[#allocation4 + $0x1a0] sm:$0xff]
    %v233 = vld [vmem:[#allocation4 + $0x1a8] sm:$0xff]
    %v234 = vld [vmem:[#allocation4 + $0x1b0] sm:$0xff]
    %v235 = vld [vmem:[#allocation4 + $0x1b8] sm:$0xff]
    %v236 = vld [vmem:[#allocation4 + $0x1c0] sm:$0xff]
    %v237 = vld [vmem:[#allocation4 + $0x1c8] sm:$0xff]
    %v238 = vld [vmem:[#allocation4 + $0x1d0] sm:$0xff]
    %v239 = vld [vmem:[#allocation4 + $0x1d8] sm:$0xff]
    %v240 = vld [vmem:[#allocation4 + $0x1e0] sm:$0xff]
    %v241 = vld [vmem:[#allocation4 + $0x1e8] sm:$0xff]
    %v242 = vld [vmem:[#allocation4 + $0x1f0] sm:$0xff]
    %v243 = vld [vmem:[#allocation4 + $0x1f8] sm:$0xff]
    %v244 = vld [vmem:[%s2] sm:$0x3]
    %v245 = vld [vmem:[%s3] sm:$0x3]
    %v246 = vand.u32 2147483647, %v116
    %v247 = vand.u32 2147483647, %v117
    %v248 = vand.u32 2147483647, %v118
    %v249 = vand.u32 2147483647, %v119
    %v250 = vand.u32 2147483647, %v120
    %v251 = vand.u32 2147483647, %v121
    %v252 = vand.u32 2147483647, %v122
    %v253 = vand.u32 2147483647, %v123
    %v254 = vand.u32 2147483647, %v124
    %v255 = vand.u32 2147483647, %v125
    %v256 = vand.u32 2147483647, %v126
    %v257 = vand.u32 2147483647, %v127
    %v258 = vand.u32 2147483647, %v128
    %v259 = vand.u32 2147483647, %v129
    %v260 = vand.u32 2147483647, %v130
    %v261 = vand.u32 2147483647, %v131
    %v262 = vand.u32 2147483647, %v132
    %v263 = vand.u32 2147483647, %v133
    %v264 = vand.u32 2147483647, %v134
    %v265 = vand.u32 2147483647, %v135
    %v266 = vand.u32 2147483647, %v136
    %v267 = vand.u32 2147483647, %v137
    %v268 = vand.u32 2147483647, %v138
    %v269 = vand.u32 2147483647, %v139
    %v270 = vand.u32 2147483647, %v140
    %v271 = vand.u32 2147483647, %v141
    %v272 = vand.u32 2147483647, %v142
    %v273 = vand.u32 2147483647, %v143
    %v274 = vand.u32 2147483647, %v144
    %v275 = vand.u32 2147483647, %v145
    %v276 = vand.u32 2147483647, %v146
    %v277 = vand.u32 2147483647, %v147
    %v278 = vand.u32 2147483647, %v148
    %v279 = vand.u32 2147483647, %v149
    %v280 = vand.u32 2147483647, %v150
    %v281 = vand.u32 2147483647, %v151
    %v282 = vand.u32 2147483647, %v152
    %v283 = vand.u32 2147483647, %v153
    %v284 = vand.u32 2147483647, %v154
    %v285 = vand.u32 2147483647, %v155
    %v286 = vand.u32 2147483647, %v156
    %v287 = vand.u32 2147483647, %v157
    %v288 = vand.u32 2147483647, %v158
    %v289 = vand.u32 2147483647, %v159
    %v290 = vand.u32 2147483647, %v160
    %v291 = vand.u32 2147483647, %v161
    %v292 = vand.u32 2147483647, %v162
    %v293 = vand.u32 2147483647, %v163
    %v294 = vand.u32 2147483647, %v164
    %v295 = vand.u32 2147483647, %v165
    %v296 = vand.u32 2147483647, %v166
    %v297 = vand.u32 2147483647, %v167
    %v298 = vand.u32 2147483647, %v168
    %v299 = vand.u32 2147483647, %v169
    %v300 = vand.u32 2147483647, %v170
    %v301 = vand.u32 2147483647, %v171
    %v302 = vand.u32 2147483647, %v172
    %v303 = vand.u32 2147483647, %v173
    %v304 = vand.u32 2147483647, %v174
    %v305 = vand.u32 2147483647, %v175
    %v306 = vand.u32 2147483647, %v176
    %v307 = vand.u32 2147483647, %v177
    %v308 = vand.u32 2147483647, %v178
    %v309 = vand.u32 2147483647, %v179
    %v310 = vand.u32 2147483647, %v180
    %v311 = vand.u32 2147483647, %v181
    %v312 = vand.u32 2147483647, %v182
    %v313 = vand.u32 2147483647, %v183
    %v314 = vand.u32 2147483647, %v184
    %v315 = vand.u32 2147483647, %v185
    %v316 = vand.u32 2147483647, %v186
    %v317 = vand.u32 2147483647, %v187
    %v318 = vand.u32 2147483647, %v188
    %v319 = vand.u32 2147483647, %v189
    %v320 = vand.u32 2147483647, %v190
    %v321 = vand.u32 2147483647, %v191
    %v322 = vand.u32 2147483647, %v192
    %v323 = vand.u32 2147483647, %v193
    %v324 = vand.u32 2147483647, %v194
    %v325 = vand.u32 2147483647, %v195
    %v326 = vand.u32 2147483647, %v196
    %v327 = vand.u32 2147483647, %v197
    %v328 = vand.u32 2147483647, %v198
    %v329 = vand.u32 2147483647, %v199
    %v330 = vand.u32 2147483647, %v200
    %v331 = vand.u32 2147483647, %v201
    %v332 = vand.u32 2147483647, %v202
    %v333 = vand.u32 2147483647, %v203
    %v334 = vand.u32 2147483647, %v204
    %v335 = vand.u32 2147483647, %v205
    %v336 = vand.u32 2147483647, %v206
    %v337 = vand.u32 2147483647, %v207
    %v338 = vand.u32 2147483647, %v208
    %v339 = vand.u32 2147483647, %v209
    %v340 = vand.u32 2147483647, %v210
    %v341 = vand.u32 2147483647, %v211
    %v342 = vand.u32 2147483647, %v212
    %v343 = vand.u32 2147483647, %v213
    %v344 = vand.u32 2147483647, %v214
    %v345 = vand.u32 2147483647, %v215
    %v346 = vand.u32 2147483647, %v216
    %v347 = vand.u32 2147483647, %v217
    %v348 = vand.u32 2147483647, %v218
    %v349 = vand.u32 2147483647, %v219
    %v350 = vand.u32 2147483647, %v220
    %v351 = vand.u32 2147483647, %v221
    %v352 = vand.u32 2147483647, %v222
    %v353 = vand.u32 2147483647, %v223
    %v354 = vand.u32 2147483647, %v224
    %v355 = vand.u32 2147483647, %v225
    %v356 = vand.u32 2147483647, %v226
    %v357 = vand.u32 2147483647, %v227
    %v358 = vand.u32 2147483647, %v228
    %v359 = vand.u32 2147483647, %v229
    %v360 = vand.u32 2147483647, %v230
    %v361 = vand.u32 2147483647, %v231
    %v362 = vand.u32 2147483647, %v232
    %v363 = vand.u32 2147483647, %v233
    %v364 = vand.u32 2147483647, %v234
    %v365 = vand.u32 2147483647, %v235
    %v366 = vand.u32 2147483647, %v236
    %v367 = vand.u32 2147483647, %v237
    %v368 = vand.u32 2147483647, %v238
    %v369 = vand.u32 2147483647, %v239
    %v370 = vand.u32 2147483647, %v240
    %v371 = vand.u32 2147483647, %v241
    %v372 = vand.u32 2147483647, %v242
    %v373 = vand.u32 2147483647, %v243
    %v374 = vadd.f32 %v116, %v246
    %v375 = vadd.f32 %v117, %v247
    %v376 = vadd.f32 %v118, %v248
    %v377 = vadd.f32 %v119, %v249
    %v378 = vadd.f32 %v120, %v250
    %v379 = vadd.f32 %v121, %v251
    %v380 = vadd.f32 %v122, %v252
    %v381 = vadd.f32 %v123, %v253
    %v382 = vadd.f32 %v124, %v254
    %v383 = vadd.f32 %v125, %v255
    %v384 = vadd.f32 %v126, %v256
    %v385 = vadd.f32 %v127, %v257
    %v386 = vadd.f32 %v128, %v258
    %v387 = vadd.f32 %v129, %v259
    %v388 = vadd.f32 %v130, %v260
    %v389 = vadd.f32 %v131, %v261
    %v390 = vadd.f32 %v132, %v262
    %v391 = vadd.f32 %v133, %v263
    %v392 = vadd.f32 %v134, %v264
    %v393 = vadd.f32 %v135, %v265
    %v394 = vadd.f32 %v136, %v266
    %v395 = vadd.f32 %v137, %v267
    %v396 = vadd.f32 %v138, %v268
    %v397 = vadd.f32 %v139, %v269
    %v398 = vadd.f32 %v140, %v270
    %v399 = vadd.f32 %v141, %v271
    %v400 = vadd.f32 %v142, %v272
    %v401 = vadd.f32 %v143, %v273
    %v402 = vadd.f32 %v144, %v274
    %v403 = vadd.f32 %v145, %v275
    %v404 = vadd.f32 %v146, %v276
    %v405 = vadd.f32 %v147, %v277
    %v406 = vadd.f32 %v148, %v278
    %v407 = vadd.f32 %v149, %v279
    %v408 = vadd.f32 %v150, %v280
    %v409 = vadd.f32 %v151, %v281
    %v410 = vadd.f32 %v152, %v282
    %v411 = vadd.f32 %v153, %v283
    %v412 = vadd.f32 %v154, %v284
    %v413 = vadd.f32 %v155, %v285
    %v414 = vadd.f32 %v156, %v286
    %v415 = vadd.f32 %v157, %v287
    %v416 = vadd.f32 %v158, %v288
    %v417 = vadd.f32 %v159, %v289
    %v418 = vadd.f32 %v160, %v290
    %v419 = vadd.f32 %v161, %v291
    %v420 = vadd.f32 %v162, %v292
    %v421 = vadd.f32 %v163, %v293
    %v422 = vadd.f32 %v164, %v294
    %v423 = vadd.f32 %v165, %v295
    %v424 = vadd.f32 %v166, %v296
    %v425 = vadd.f32 %v167, %v297
    %v426 = vadd.f32 %v168, %v298
    %v427 = vadd.f32 %v169, %v299
    %v428 = vadd.f32 %v170, %v300
    %v429 = vadd.f32 %v171, %v301
    %v430 = vadd.f32 %v172, %v302
    %v431 = vadd.f32 %v173, %v303
    %v432 = vadd.f32 %v174, %v304
    %v433 = vadd.f32 %v175, %v305
    %v434 = vadd.f32 %v176, %v306
    %v435 = vadd.f32 %v177, %v307
    %v436 = vadd.f32 %v178, %v308
    %v437 = vadd.f32 %v179, %v309
    %v439 = vlaneseq
    %v440 = vshrl.u32 %v439, 7
    %v441 = vsub.s32 0, %v440
    %v442 = vrot.slane %v244, %v441
    %v443 = vlaneseq
    %v444 = vshrl.u32 %v443, 7
    %v445 = vsub.s32 1, %v444
    %v446 = vrot.slane %v244, %v445
    %v449 = vmul.f32 %v374, %v442
    %v450 = vmul.f32 %v375, %v446
    %v451 = vmul.f32 %v376, %v442
    %v452 = vmul.f32 %v377, %v446
    %v453 = vmul.f32 %v378, %v442
    %v454 = vmul.f32 %v379, %v446
    %v455 = vmul.f32 %v380, %v442
    %v456 = vmul.f32 %v381, %v446
    %v457 = vmul.f32 %v382, %v442
    %v458 = vmul.f32 %v383, %v446
    %v459 = vmul.f32 %v384, %v442
    %v460 = vmul.f32 %v385, %v446
    %v461 = vmul.f32 %v386, %v442
    %v462 = vmul.f32 %v387, %v446
    %v463 = vmul.f32 %v388, %v442
    %v464 = vmul.f32 %v389, %v446
    %v465 = vmul.f32 %v390, %v442
    %v466 = vmul.f32 %v391, %v446
    %v467 = vmul.f32 %v392, %v442
    %v468 = vmul.f32 %v393, %v446
    %v469 = vmul.f32 %v394, %v442
    %v470 = vmul.f32 %v395, %v446
    %v471 = vmul.f32 %v396, %v442
    %v472 = vmul.f32 %v397, %v446
    %v473 = vmul.f32 %v398, %v442
    %v474 = vmul.f32 %v399, %v446
    %v475 = vmul.f32 %v400, %v442
    %v476 = vmul.f32 %v401, %v446
    %v477 = vmul.f32 %v402, %v442
    %v478 = vmul.f32 %v403, %v446
    %v479 = vmul.f32 %v404, %v442
    %v480 = vmul.f32 %v405, %v446
    %v481 = vmul.f32 %v406, %v442
    %v482 = vmul.f32 %v407, %v446
    %v483 = vmul.f32 %v408, %v442
    %v484 = vmul.f32 %v409, %v446
    %v485 = vmul.f32 %v410, %v442
    %v486 = vmul.f32 %v411, %v446
    %v487 = vmul.f32 %v412, %v442
    %v488 = vmul.f32 %v413, %v446
    %v489 = vmul.f32 %v414, %v442
    %v490 = vmul.f32 %v415, %v446
    %v491 = vmul.f32 %v416, %v442
    %v492 = vmul.f32 %v417, %v446
    %v493 = vmul.f32 %v418, %v442
    %v494 = vmul.f32 %v419, %v446
    %v495 = vmul.f32 %v420, %v442
    %v496 = vmul.f32 %v421, %v446
    %v497 = vmul.f32 %v422, %v442
    %v498 = vmul.f32 %v423, %v446
    %v499 = vmul.f32 %v424, %v442
    %v500 = vmul.f32 %v425, %v446
    %v501 = vmul.f32 %v426, %v442
    %v502 = vmul.f32 %v427, %v446
    %v503 = vmul.f32 %v428, %v442
    %v504 = vmul.f32 %v429, %v446
    %v505 = vmul.f32 %v430, %v442
    %v506 = vmul.f32 %v431, %v446
    %v507 = vmul.f32 %v432, %v442
    %v508 = vmul.f32 %v433, %v446
    %v509 = vmul.f32 %v434, %v442
    %v510 = vmul.f32 %v435, %v446
    %v511 = vmul.f32 %v436, %v442
    %v512 = vmul.f32 %v437, %v446
    %v513 = vsub.f32 %v116, %v246
    %v514 = vsub.f32 %v117, %v247
    %v515 = vsub.f32 %v118, %v248
    %v516 = vsub.f32 %v119, %v249
    %v517 = vsub.f32 %v120, %v250
    %v518 = vsub.f32 %v121, %v251
    %v519 = vsub.f32 %v122, %v252
    %v520 = vsub.f32 %v123, %v253
    %v521 = vsub.f32 %v124, %v254
    %v522 = vsub.f32 %v125, %v255
    %v523 = vsub.f32 %v126, %v256
    %v524 = vsub.f32 %v127, %v257
    %v525 = vsub.f32 %v128, %v258
    %v526 = vsub.f32 %v129, %v259
    %v527 = vsub.f32 %v130, %v260
    %v528 = vsub.f32 %v131, %v261
    %v529 = vsub.f32 %v132, %v262
    %v530 = vsub.f32 %v133, %v263
    %v531 = vsub.f32 %v134, %v264
    %v532 = vsub.f32 %v135, %v265
    %v533 = vsub.f32 %v136, %v266
    %v534 = vsub.f32 %v137, %v267
    %v535 = vsub.f32 %v138, %v268
    %v536 = vsub.f32 %v139, %v269
    %v537 = vsub.f32 %v140, %v270
    %v538 = vsub.f32 %v141, %v271
    %v539 = vsub.f32 %v142, %v272
    %v540 = vsub.f32 %v143, %v273
    %v541 = vsub.f32 %v144, %v274
    %v542 = vsub.f32 %v145, %v275
    %v543 = vsub.f32 %v146, %v276
    %v544 = vsub.f32 %v147, %v277
    %v545 = vsub.f32 %v148, %v278
    %v546 = vsub.f32 %v149, %v279
    %v547 = vsub.f32 %v150, %v280
    %v548 = vsub.f32 %v151, %v281
    %v549 = vsub.f32 %v152, %v282
    %v550 = vsub.f32 %v153, %v283
    %v551 = vsub.f32 %v154, %v284
    %v552 = vsub.f32 %v155, %v285
    %v553 = vsub.f32 %v156, %v286
    %v554 = vsub.f32 %v157, %v287
    %v555 = vsub.f32 %v158, %v288
    %v556 = vsub.f32 %v159, %v289
    %v557 = vsub.f32 %v160, %v290
    %v558 = vsub.f32 %v161, %v291
    %v559 = vsub.f32 %v162, %v292
    %v560 = vsub.f32 %v163, %v293
    %v561 = vsub.f32 %v164, %v294
    %v562 = vsub.f32 %v165, %v295
    %v563 = vsub.f32 %v166, %v296
    %v564 = vsub.f32 %v167, %v297
    %v565 = vsub.f32 %v168, %v298
    %v566 = vsub.f32 %v169, %v299
    %v567 = vsub.f32 %v170, %v300
    %v568 = vsub.f32 %v171, %v301
    %v569 = vsub.f32 %v172, %v302
    %v570 = vsub.f32 %v173, %v303
    %v571 = vsub.f32 %v174, %v304
    %v572 = vsub.f32 %v175, %v305
    %v573 = vsub.f32 %v176, %v306
    %v574 = vsub.f32 %v177, %v307
    %v575 = vsub.f32 %v178, %v308
    %v576 = vsub.f32 %v179, %v309
    %v578 = vlaneseq
    %v579 = vshrl.u32 %v578, 7
    %v580 = vsub.s32 0, %v579
    %v581 = vrot.slane %v245, %v580
    %v582 = vlaneseq
    %v583 = vshrl.u32 %v582, 7
    %v584 = vsub.s32 1, %v583
    %v585 = vrot.slane %v245, %v584
    %v588 = vmul.f32 %v513, %v581
    %v589 = vmul.f32 %v514, %v585
    %v590 = vmul.f32 %v515, %v581
    %v591 = vmul.f32 %v516, %v585
    %v592 = vmul.f32 %v517, %v581
    %v593 = vmul.f32 %v518, %v585
    %v594 = vmul.f32 %v519, %v581
    %v595 = vmul.f32 %v520, %v585
    %v596 = vmul.f32 %v521, %v581
    %v597 = vmul.f32 %v522, %v585
    %v598 = vmul.f32 %v523, %v581
    %v599 = vmul.f32 %v524, %v585
    %v600 = vmul.f32 %v525, %v581
    %v601 = vmul.f32 %v526, %v585
    %v602 = vmul.f32 %v527, %v581
    %v603 = vmul.f32 %v528, %v585
    %v604 = vmul.f32 %v529, %v581
    %v605 = vmul.f32 %v530, %v585
    %v606 = vmul.f32 %v531, %v581
    %v607 = vmul.f32 %v532, %v585
    %v608 = vmul.f32 %v533, %v581
    %v609 = vmul.f32 %v534, %v585
    %v610 = vmul.f32 %v535, %v581
    %v611 = vmul.f32 %v536, %v585
    %v612 = vmul.f32 %v537, %v581
    %v613 = vmul.f32 %v538, %v585
    %v614 = vmul.f32 %v539, %v581
    %v615 = vmul.f32 %v540, %v585
    %v616 = vmul.f32 %v541, %v581
    %v617 = vmul.f32 %v542, %v585
    %v618 = vmul.f32 %v543, %v581
    %v619 = vmul.f32 %v544, %v585
    %v620 = vmul.f32 %v545, %v581
    %v621 = vmul.f32 %v546, %v585
    %v622 = vmul.f32 %v547, %v581
    %v623 = vmul.f32 %v548, %v585
    %v624 = vmul.f32 %v549, %v581
    %v625 = vmul.f32 %v550, %v585
    %v626 = vmul.f32 %v551, %v581
    %v627 = vmul.f32 %v552, %v585
    %v628 = vmul.f32 %v553, %v581
    %v629 = vmul.f32 %v554, %v585
    %v630 = vmul.f32 %v555, %v581
    %v631 = vmul.f32 %v556, %v585
    %v632 = vmul.f32 %v557, %v581
    %v633 = vmul.f32 %v558, %v585
    %v634 = vmul.f32 %v559, %v581
    %v635 = vmul.f32 %v560, %v585
    %v636 = vmul.f32 %v561, %v581
    %v637 = vmul.f32 %v562, %v585
    %v638 = vmul.f32 %v563, %v581
    %v639 = vmul.f32 %v564, %v585
    %v640 = vmul.f32 %v565, %v581
    %v641 = vmul.f32 %v566, %v585
    %v642 = vmul.f32 %v567, %v581
    %v643 = vmul.f32 %v568, %v585
    %v644 = vmul.f32 %v569, %v581
    %v645 = vmul.f32 %v570, %v585
    %v646 = vmul.f32 %v571, %v581
    %v647 = vmul.f32 %v572, %v585
    %v648 = vmul.f32 %v573, %v581
    %v649 = vmul.f32 %v574, %v585
    %v650 = vmul.f32 %v575, %v581
    %v651 = vmul.f32 %v576, %v585
    %v652 = vadd.f32 %v449, %v588
    %v653 = vadd.f32 %v450, %v589
    %v654 = vadd.f32 %v451, %v590
    %v655 = vadd.f32 %v452, %v591
    %v656 = vadd.f32 %v453, %v592
    %v657 = vadd.f32 %v454, %v593
    %v658 = vadd.f32 %v455, %v594
    %v659 = vadd.f32 %v456, %v595
    %v660 = vadd.f32 %v457, %v596
    %v661 = vadd.f32 %v458, %v597
    %v662 = vadd.f32 %v459, %v598
    %v663 = vadd.f32 %v460, %v599
    %v664 = vadd.f32 %v461, %v600
    %v665 = vadd.f32 %v462, %v601
    %v666 = vadd.f32 %v463, %v602
    %v667 = vadd.f32 %v464, %v603
    %v668 = vadd.f32 %v465, %v604
    %v669 = vadd.f32 %v466, %v605
    %v670 = vadd.f32 %v467, %v606
    %v671 = vadd.f32 %v468, %v607
    %v672 = vadd.f32 %v469, %v608
    %v673 = vadd.f32 %v470, %v609
    %v674 = vadd.f32 %v471, %v610
    %v675 = vadd.f32 %v472, %v611
    %v676 = vadd.f32 %v473, %v612
    %v677 = vadd.f32 %v474, %v613
    %v678 = vadd.f32 %v475, %v614
    %v679 = vadd.f32 %v476, %v615
    %v680 = vadd.f32 %v477, %v616
    %v681 = vadd.f32 %v478, %v617
    %v682 = vadd.f32 %v479, %v618
    %v683 = vadd.f32 %v480, %v619
    %v684 = vadd.f32 %v481, %v620
    %v685 = vadd.f32 %v482, %v621
    %v686 = vadd.f32 %v483, %v622
    %v687 = vadd.f32 %v484, %v623
    %v688 = vadd.f32 %v485, %v624
    %v689 = vadd.f32 %v486, %v625
    %v690 = vadd.f32 %v487, %v626
    %v691 = vadd.f32 %v488, %v627
    %v692 = vadd.f32 %v489, %v628
    %v693 = vadd.f32 %v490, %v629
    %v694 = vadd.f32 %v491, %v630
    %v695 = vadd.f32 %v492, %v631
    %v696 = vadd.f32 %v493, %v632
    %v697 = vadd.f32 %v494, %v633
    %v698 = vadd.f32 %v495, %v634
    %v699 = vadd.f32 %v496, %v635
    %v700 = vadd.f32 %v497, %v636
    %v701 = vadd.f32 %v498, %v637
    %v702 = vadd.f32 %v499, %v638
    %v703 = vadd.f32 %v500, %v639
    %v704 = vadd.f32 %v501, %v640
    %v705 = vadd.f32 %v502, %v641
    %v706 = vadd.f32 %v503, %v642
    %v707 = vadd.f32 %v504, %v643
    %v708 = vadd.f32 %v505, %v644
    %v709 = vadd.f32 %v506, %v645
    %v710 = vadd.f32 %v507, %v646
    %v711 = vadd.f32 %v508, %v647
    %v712 = vadd.f32 %v509, %v648
    %v713 = vadd.f32 %v510, %v649
    %v714 = vadd.f32 %v511, %v650
    %v715 = vadd.f32 %v512, %v651
    %v716 = vmul.f32 %v652, 0.5
    %v717 = vmul.f32 %v653, 0.5
    %v718 = vmul.f32 %v654, 0.5
    %v719 = vmul.f32 %v655, 0.5
    %v720 = vmul.f32 %v656, 0.5
    %v721 = vmul.f32 %v657, 0.5
    %v722 = vmul.f32 %v658, 0.5
    %v723 = vmul.f32 %v659, 0.5
    %v724 = vmul.f32 %v660, 0.5
    %v725 = vmul.f32 %v661, 0.5
    %v726 = vmul.f32 %v662, 0.5
    %v727 = vmul.f32 %v663, 0.5
    %v728 = vmul.f32 %v664, 0.5
    %v729 = vmul.f32 %v665, 0.5
    %v730 = vmul.f32 %v666, 0.5
    %v731 = vmul.f32 %v667, 0.5
    %v732 = vmul.f32 %v668, 0.5
    %v733 = vmul.f32 %v669, 0.5
    %v734 = vmul.f32 %v670, 0.5
    %v735 = vmul.f32 %v671, 0.5
    %v736 = vmul.f32 %v672, 0.5
    %v737 = vmul.f32 %v673, 0.5
    %v738 = vmul.f32 %v674, 0.5
    %v739 = vmul.f32 %v675, 0.5
    %v740 = vmul.f32 %v676, 0.5
    %v741 = vmul.f32 %v677, 0.5
    %v742 = vmul.f32 %v678, 0.5
    %v743 = vmul.f32 %v679, 0.5
    %v744 = vmul.f32 %v680, 0.5
    %v745 = vmul.f32 %v681, 0.5
    %v746 = vmul.f32 %v682, 0.5
    %v747 = vmul.f32 %v683, 0.5
    %v748 = vmul.f32 %v684, 0.5
    %v749 = vmul.f32 %v685, 0.5
    %v750 = vmul.f32 %v686, 0.5
    %v751 = vmul.f32 %v687, 0.5
    %v752 = vmul.f32 %v688, 0.5
    %v753 = vmul.f32 %v689, 0.5
    %v754 = vmul.f32 %v690, 0.5
    %v755 = vmul.f32 %v691, 0.5
    %v756 = vmul.f32 %v692, 0.5
    %v757 = vmul.f32 %v693, 0.5
    %v758 = vmul.f32 %v694, 0.5
    %v759 = vmul.f32 %v695, 0.5
    %v760 = vmul.f32 %v696, 0.5
    %v761 = vmul.f32 %v697, 0.5
    %v762 = vmul.f32 %v698, 0.5
    %v763 = vmul.f32 %v699, 0.5
    %v764 = vmul.f32 %v700, 0.5
    %v765 = vmul.f32 %v701, 0.5
    %v766 = vmul.f32 %v702, 0.5
    %v767 = vmul.f32 %v703, 0.5
    %v768 = vmul.f32 %v704, 0.5
    %v769 = vmul.f32 %v705, 0.5
    %v770 = vmul.f32 %v706, 0.5
    %v771 = vmul.f32 %v707, 0.5
    %v772 = vmul.f32 %v708, 0.5
    %v773 = vmul.f32 %v709, 0.5
    %v774 = vmul.f32 %v710, 0.5
    %v775 = vmul.f32 %v711, 0.5
    %v776 = vmul.f32 %v712, 0.5
    %v777 = vmul.f32 %v713, 0.5
    %v778 = vmul.f32 %v714, 0.5
    %v779 = vmul.f32 %v715, 0.5
    %v780 = vadd.f32 %v180, %v310
    %v781 = vadd.f32 %v181, %v311
    %v782 = vadd.f32 %v182, %v312
    %v783 = vadd.f32 %v183, %v313
    %v784 = vadd.f32 %v184, %v314
    %v785 = vadd.f32 %v185, %v315
    %v786 = vadd.f32 %v186, %v316
    %v787 = vadd.f32 %v187, %v317
    %v788 = vadd.f32 %v188, %v318
    %v789 = vadd.f32 %v189, %v319
    %v790 = vadd.f32 %v190, %v320
    %v791 = vadd.f32 %v191, %v321
    %v792 = vadd.f32 %v192, %v322
    %v793 = vadd.f32 %v193, %v323
    %v794 = vadd.f32 %v194, %v324
    %v795 = vadd.f32 %v195, %v325
    %v796 = vadd.f32 %v196, %v326
    %v797 = vadd.f32 %v197, %v327
    %v798 = vadd.f32 %v198, %v328
    %v799 = vadd.f32 %v199, %v329
    %v800 = vadd.f32 %v200, %v330
    %v801 = vadd.f32 %v201, %v331
    %v802 = vadd.f32 %v202, %v332
    %v803 = vadd.f32 %v203, %v333
    %v804 = vadd.f32 %v204, %v334
    %v805 = vadd.f32 %v205, %v335
    %v806 = vadd.f32 %v206, %v336
    %v807 = vadd.f32 %v207, %v337
    %v808 = vadd.f32 %v208, %v338
    %v809 = vadd.f32 %v209, %v339
    %v810 = vadd.f32 %v210, %v340
    %v811 = vadd.f32 %v211, %v341
    %v812 = vadd.f32 %v212, %v342
    %v813 = vadd.f32 %v213, %v343
    %v814 = vadd.f32 %v214, %v344
    %v815 = vadd.f32 %v215, %v345
    %v816 = vadd.f32 %v216, %v346
    %v817 = vadd.f32 %v217, %v347
    %v818 = vadd.f32 %v218, %v348
    %v819 = vadd.f32 %v219, %v349
    %v820 = vadd.f32 %v220, %v350
    %v821 = vadd.f32 %v221, %v351
    %v822 = vadd.f32 %v222, %v352
    %v823 = vadd.f32 %v223, %v353
    %v824 = vadd.f32 %v224, %v354
    %v825 = vadd.f32 %v225, %v355
    %v826 = vadd.f32 %v226, %v356
    %v827 = vadd.f32 %v227, %v357
    %v828 = vadd.f32 %v228, %v358
    %v829 = vadd.f32 %v229, %v359
    %v830 = vadd.f32 %v230, %v360
    %v831 = vadd.f32 %v231, %v361
    %v832 = vadd.f32 %v232, %v362
    %v833 = vadd.f32 %v233, %v363
    %v834 = vadd.f32 %v234, %v364
    %v835 = vadd.f32 %v235, %v365
    %v836 = vadd.f32 %v236, %v366
    %v837 = vadd.f32 %v237, %v367
    %v838 = vadd.f32 %v238, %v368
    %v839 = vadd.f32 %v239, %v369
    %v840 = vadd.f32 %v240, %v370
    %v841 = vadd.f32 %v241, %v371
    %v842 = vadd.f32 %v242, %v372
    %v843 = vadd.f32 %v243, %v373
    %v844 = vmul.f32 %v780, %v581
    %v845 = vmul.f32 %v781, %v585
    %v846 = vmul.f32 %v782, %v581
    %v847 = vmul.f32 %v783, %v585
    %v848 = vmul.f32 %v784, %v581
    %v849 = vmul.f32 %v785, %v585
    %v850 = vmul.f32 %v786, %v581
    %v851 = vmul.f32 %v787, %v585
    %v852 = vmul.f32 %v788, %v581
    %v853 = vmul.f32 %v789, %v585
    %v854 = vmul.f32 %v790, %v581
    %v855 = vmul.f32 %v791, %v585
    %v856 = vmul.f32 %v792, %v581
    %v857 = vmul.f32 %v793, %v585
    %v858 = vmul.f32 %v794, %v581
    %v859 = vmul.f32 %v795, %v585
    %v860 = vmul.f32 %v796, %v581
    %v861 = vmul.f32 %v797, %v585
    %v862 = vmul.f32 %v798, %v581
    %v863 = vmul.f32 %v799, %v585
    %v864 = vmul.f32 %v800, %v581
    %v865 = vmul.f32 %v801, %v585
    %v866 = vmul.f32 %v802, %v581
    %v867 = vmul.f32 %v803, %v585
    %v868 = vmul.f32 %v804, %v581
    %v869 = vmul.f32 %v805, %v585
    %v870 = vmul.f32 %v806, %v581
    %v871 = vmul.f32 %v807, %v585
    %v872 = vmul.f32 %v808, %v581
    %v873 = vmul.f32 %v809, %v585
    %v874 = vmul.f32 %v810, %v581
    %v875 = vmul.f32 %v811, %v585
    %v876 = vmul.f32 %v812, %v581
    %v877 = vmul.f32 %v813, %v585
    %v878 = vmul.f32 %v814, %v581
    %v879 = vmul.f32 %v815, %v585
    %v880 = vmul.f32 %v816, %v581
    %v881 = vmul.f32 %v817, %v585
    %v882 = vmul.f32 %v818, %v581
    %v883 = vmul.f32 %v819, %v585
    %v884 = vmul.f32 %v820, %v581
    %v885 = vmul.f32 %v821, %v585
    %v886 = vmul.f32 %v822, %v581
    %v887 = vmul.f32 %v823, %v585
    %v888 = vmul.f32 %v824, %v581
    %v889 = vmul.f32 %v825, %v585
    %v890 = vmul.f32 %v826, %v581
    %v891 = vmul.f32 %v827, %v585
    %v892 = vmul.f32 %v828, %v581
    %v893 = vmul.f32 %v829, %v585
    %v894 = vmul.f32 %v830, %v581
    %v895 = vmul.f32 %v831, %v585
    %v896 = vmul.f32 %v832, %v581
    %v897 = vmul.f32 %v833, %v585
    %v898 = vmul.f32 %v834, %v581
    %v899 = vmul.f32 %v835, %v585
    %v900 = vmul.f32 %v836, %v581
    %v901 = vmul.f32 %v837, %v585
    %v902 = vmul.f32 %v838, %v581
    %v903 = vmul.f32 %v839, %v585
    %v904 = vmul.f32 %v840, %v581
    %v905 = vmul.f32 %v841, %v585
    %v906 = vmul.f32 %v842, %v581
    %v907 = vmul.f32 %v843, %v585
    %v908 = vsub.f32 %v180, %v310
    %v909 = vsub.f32 %v181, %v311
    %v910 = vsub.f32 %v182, %v312
    %v911 = vsub.f32 %v183, %v313
    %v912 = vsub.f32 %v184, %v314
    %v913 = vsub.f32 %v185, %v315
    %v914 = vsub.f32 %v186, %v316
    %v915 = vsub.f32 %v187, %v317
    %v916 = vsub.f32 %v188, %v318
    %v917 = vsub.f32 %v189, %v319
    %v918 = vsub.f32 %v190, %v320
    %v919 = vsub.f32 %v191, %v321
    %v920 = vsub.f32 %v192, %v322
    %v921 = vsub.f32 %v193, %v323
    %v922 = vsub.f32 %v194, %v324
    %v923 = vsub.f32 %v195, %v325
    %v924 = vsub.f32 %v196, %v326
    %v925 = vsub.f32 %v197, %v327
    %v926 = vsub.f32 %v198, %v328
    %v927 = vsub.f32 %v199, %v329
    %v928 = vsub.f32 %v200, %v330
    %v929 = vsub.f32 %v201, %v331
    %v930 = vsub.f32 %v202, %v332
    %v931 = vsub.f32 %v203, %v333
    %v932 = vsub.f32 %v204, %v334
    %v933 = vsub.f32 %v205, %v335
    %v934 = vsub.f32 %v206, %v336
    %v935 = vsub.f32 %v207, %v337
    %v936 = vsub.f32 %v208, %v338
    %v937 = vsub.f32 %v209, %v339
    %v938 = vsub.f32 %v210, %v340
    %v939 = vsub.f32 %v211, %v341
    %v940 = vsub.f32 %v212, %v342
    %v941 = vsub.f32 %v213, %v343
    %v942 = vsub.f32 %v214, %v344
    %v943 = vsub.f32 %v215, %v345
    %v944 = vsub.f32 %v216, %v346
    %v945 = vsub.f32 %v217, %v347
    %v946 = vsub.f32 %v218, %v348
    %v947 = vsub.f32 %v219, %v349
    %v948 = vsub.f32 %v220, %v350
    %v949 = vsub.f32 %v221, %v351
    %v950 = vsub.f32 %v222, %v352
    %v951 = vsub.f32 %v223, %v353
    %v952 = vsub.f32 %v224, %v354
    %v953 = vsub.f32 %v225, %v355
    %v954 = vsub.f32 %v226, %v356
    %v955 = vsub.f32 %v227, %v357
    %v956 = vsub.f32 %v228, %v358
    %v957 = vsub.f32 %v229, %v359
    %v958 = vsub.f32 %v230, %v360
    %v959 = vsub.f32 %v231, %v361
    %v960 = vsub.f32 %v232, %v362
    %v961 = vsub.f32 %v233, %v363
    %v962 = vsub.f32 %v234, %v364
    %v963 = vsub.f32 %v235, %v365
    %v964 = vsub.f32 %v236, %v366
    %v965 = vsub.f32 %v237, %v367
    %v966 = vsub.f32 %v238, %v368
    %v967 = vsub.f32 %v239, %v369
    %v968 = vsub.f32 %v240, %v370
    %v969 = vsub.f32 %v241, %v371
    %v970 = vsub.f32 %v242, %v372
    %v971 = vsub.f32 %v243, %v373
    %v972 = vmul.f32 %v908, %v442
    %v973 = vmul.f32 %v909, %v446
    %v974 = vmul.f32 %v910, %v442
    %v975 = vmul.f32 %v911, %v446
    %v976 = vmul.f32 %v912, %v442
    %v977 = vmul.f32 %v913, %v446
    %v978 = vmul.f32 %v914, %v442
    %v979 = vmul.f32 %v915, %v446
    %v980 = vmul.f32 %v916, %v442
    %v981 = vmul.f32 %v917, %v446
    %v982 = vmul.f32 %v918, %v442
    %v983 = vmul.f32 %v919, %v446
    %v984 = vmul.f32 %v920, %v442
    %v985 = vmul.f32 %v921, %v446
    %v986 = vmul.f32 %v922, %v442
    %v987 = vmul.f32 %v923, %v446
    %v988 = vmul.f32 %v924, %v442
    %v989 = vmul.f32 %v925, %v446
    %v990 = vmul.f32 %v926, %v442
    %v991 = vmul.f32 %v927, %v446
    %v992 = vmul.f32 %v928, %v442
    %v993 = vmul.f32 %v929, %v446
    %v994 = vmul.f32 %v930, %v442
    %v995 = vmul.f32 %v931, %v446
    %v996 = vmul.f32 %v932, %v442
    %v997 = vmul.f32 %v933, %v446
    %v998 = vmul.f32 %v934, %v442
    %v999 = vmul.f32 %v935, %v446
    %v1000 = vmul.f32 %v936, %v442
    %v1001 = vmul.f32 %v937, %v446
    %v1002 = vmul.f32 %v938, %v442
    %v1003 = vmul.f32 %v939, %v446
    %v1004 = vmul.f32 %v940, %v442
    %v1005 = vmul.f32 %v941, %v446
    %v1006 = vmul.f32 %v942, %v442
    %v1007 = vmul.f32 %v943, %v446
    %v1008 = vmul.f32 %v944, %v442
    %v1009 = vmul.f32 %v945, %v446
    %v1010 = vmul.f32 %v946, %v442
    %v1011 = vmul.f32 %v947, %v446
    %v1012 = vmul.f32 %v948, %v442
    %v1013 = vmul.f32 %v949, %v446
    %v1014 = vmul.f32 %v950, %v442
    %v1015 = vmul.f32 %v951, %v446
    %v1016 = vmul.f32 %v952, %v442
    %v1017 = vmul.f32 %v953, %v446
    %v1018 = vmul.f32 %v954, %v442
    %v1019 = vmul.f32 %v955, %v446
    %v1020 = vmul.f32 %v956, %v442
    %v1021 = vmul.f32 %v957, %v446
    %v1022 = vmul.f32 %v958, %v442
    %v1023 = vmul.f32 %v959, %v446
    %v1024 = vmul.f32 %v960, %v442
    %v1025 = vmul.f32 %v961, %v446
    %v1026 = vmul.f32 %v962, %v442
    %v1027 = vmul.f32 %v963, %v446
    %v1028 = vmul.f32 %v964, %v442
    %v1029 = vmul.f32 %v965, %v446
    %v1030 = vmul.f32 %v966, %v442
    %v1031 = vmul.f32 %v967, %v446
    %v1032 = vmul.f32 %v968, %v442
    %v1033 = vmul.f32 %v969, %v446
    %v1034 = vmul.f32 %v970, %v442
    %v1035 = vmul.f32 %v971, %v446
    %v1036 = vadd.f32 %v844, %v972
    %v1037 = vadd.f32 %v845, %v973
    %v1038 = vadd.f32 %v846, %v974
    %v1039 = vadd.f32 %v847, %v975
    %v1040 = vadd.f32 %v848, %v976
    %v1041 = vadd.f32 %v849, %v977
    %v1042 = vadd.f32 %v850, %v978
    %v1043 = vadd.f32 %v851, %v979
    %v1044 = vadd.f32 %v852, %v980
    %v1045 = vadd.f32 %v853, %v981
    %v1046 = vadd.f32 %v854, %v982
    %v1047 = vadd.f32 %v855, %v983
    %v1048 = vadd.f32 %v856, %v984
    %v1049 = vadd.f32 %v857, %v985
    %v1050 = vadd.f32 %v858, %v986
    %v1051 = vadd.f32 %v859, %v987
    %v1052 = vadd.f32 %v860, %v988
    %v1053 = vadd.f32 %v861, %v989
    %v1054 = vadd.f32 %v862, %v990
    %v1055 = vadd.f32 %v863, %v991
    %v1056 = vadd.f32 %v864, %v992
    %v1057 = vadd.f32 %v865, %v993
    %v1058 = vadd.f32 %v866, %v994
    %v1059 = vadd.f32 %v867, %v995
    %v1060 = vadd.f32 %v868, %v996
    %v1061 = vadd.f32 %v869, %v997
    %v1062 = vadd.f32 %v870, %v998
    %v1063 = vadd.f32 %v871, %v999
    %v1064 = vadd.f32 %v872, %v1000
    %v1065 = vadd.f32 %v873, %v1001
    %v1066 = vadd.f32 %v874, %v1002
    %v1067 = vadd.f32 %v875, %v1003
    %v1068 = vadd.f32 %v876, %v1004
    %v1069 = vadd.f32 %v877, %v1005
    %v1070 = vadd.f32 %v878, %v1006
    %v1071 = vadd.f32 %v879, %v1007
    %v1072 = vadd.f32 %v880, %v1008
    %v1073 = vadd.f32 %v881, %v1009
    %v1074 = vadd.f32 %v882, %v1010
    %v1075 = vadd.f32 %v883, %v1011
    %v1076 = vadd.f32 %v884, %v1012
    %v1077 = vadd.f32 %v885, %v1013
    %v1078 = vadd.f32 %v886, %v1014
    %v1079 = vadd.f32 %v887, %v1015
    %v1080 = vadd.f32 %v888, %v1016
    %v1081 = vadd.f32 %v889, %v1017
    %v1082 = vadd.f32 %v890, %v1018
    %v1083 = vadd.f32 %v891, %v1019
    %v1084 = vadd.f32 %v892, %v1020
    %v1085 = vadd.f32 %v893, %v1021
    %v1086 = vadd.f32 %v894, %v1022
    %v1087 = vadd.f32 %v895, %v1023
    %v1088 = vadd.f32 %v896, %v1024
    %v1089 = vadd.f32 %v897, %v1025
    %v1090 = vadd.f32 %v898, %v1026
    %v1091 = vadd.f32 %v899, %v1027
    %v1092 = vadd.f32 %v900, %v1028
    %v1093 = vadd.f32 %v901, %v1029
    %v1094 = vadd.f32 %v902, %v1030
    %v1095 = vadd.f32 %v903, %v1031
    %v1096 = vadd.f32 %v904, %v1032
    %v1097 = vadd.f32 %v905, %v1033
    %v1098 = vadd.f32 %v906, %v1034
    %v1099 = vadd.f32 %v907, %v1035
    %v1100 = vmul.f32 %v1036, 0.5
    %v1101 = vmul.f32 %v1037, 0.5
    %v1102 = vmul.f32 %v1038, 0.5
    %v1103 = vmul.f32 %v1039, 0.5
    %v1104 = vmul.f32 %v1040, 0.5
    %v1105 = vmul.f32 %v1041, 0.5
    %v1106 = vmul.f32 %v1042, 0.5
    %v1107 = vmul.f32 %v1043, 0.5
    %v1108 = vmul.f32 %v1044, 0.5
    %v1109 = vmul.f32 %v1045, 0.5
    %v1110 = vmul.f32 %v1046, 0.5
    %v1111 = vmul.f32 %v1047, 0.5
    %v1112 = vmul.f32 %v1048, 0.5
    %v1113 = vmul.f32 %v1049, 0.5
    %v1114 = vmul.f32 %v1050, 0.5
    %v1115 = vmul.f32 %v1051, 0.5
    %v1116 = vmul.f32 %v1052, 0.5
    %v1117 = vmul.f32 %v1053, 0.5
    %v1118 = vmul.f32 %v1054, 0.5
    %v1119 = vmul.f32 %v1055, 0.5
    %v1120 = vmul.f32 %v1056, 0.5
    %v1121 = vmul.f32 %v1057, 0.5
    %v1122 = vmul.f32 %v1058, 0.5
    %v1123 = vmul.f32 %v1059, 0.5
    %v1124 = vmul.f32 %v1060, 0.5
    %v1125 = vmul.f32 %v1061, 0.5
    %v1126 = vmul.f32 %v1062, 0.5
    %v1127 = vmul.f32 %v1063, 0.5
    %v1128 = vmul.f32 %v1064, 0.5
    %v1129 = vmul.f32 %v1065, 0.5
    %v1130 = vmul.f32 %v1066, 0.5
    %v1131 = vmul.f32 %v1067, 0.5
    %v1132 = vmul.f32 %v1068, 0.5
    %v1133 = vmul.f32 %v1069, 0.5
    %v1134 = vmul.f32 %v1070, 0.5
    %v1135 = vmul.f32 %v1071, 0.5
    %v1136 = vmul.f32 %v1072, 0.5
    %v1137 = vmul.f32 %v1073, 0.5
    %v1138 = vmul.f32 %v1074, 0.5
    %v1139 = vmul.f32 %v1075, 0.5
    %v1140 = vmul.f32 %v1076, 0.5
    %v1141 = vmul.f32 %v1077, 0.5
    %v1142 = vmul.f32 %v1078, 0.5
    %v1143 = vmul.f32 %v1079, 0.5
    %v1144 = vmul.f32 %v1080, 0.5
    %v1145 = vmul.f32 %v1081, 0.5
    %v1146 = vmul.f32 %v1082, 0.5
    %v1147 = vmul.f32 %v1083, 0.5
    %v1148 = vmul.f32 %v1084, 0.5
    %v1149 = vmul.f32 %v1085, 0.5
    %v1150 = vmul.f32 %v1086, 0.5
    %v1151 = vmul.f32 %v1087, 0.5
    %v1152 = vmul.f32 %v1088, 0.5
    %v1153 = vmul.f32 %v1089, 0.5
    %v1154 = vmul.f32 %v1090, 0.5
    %v1155 = vmul.f32 %v1091, 0.5
    %v1156 = vmul.f32 %v1092, 0.5
    %v1157 = vmul.f32 %v1093, 0.5
    %v1158 = vmul.f32 %v1094, 0.5
    %v1159 = vmul.f32 %v1095, 0.5
    %v1160 = vmul.f32 %v1096, 0.5
    %v1161 = vmul.f32 %v1097, 0.5
    %v1162 = vmul.f32 %v1098, 0.5
    %v1163 = vmul.f32 %v1099, 0.5
    %v1164 = vld [vmem:[%s4] sm:$0xff]
    %v1165 = vld [vmem:[%s4 + $0x8] sm:$0xff]
    %v1166 = vld [vmem:[%s4 + $0x10] sm:$0xff]
    %v1167 = vld [vmem:[%s4 + $0x18] sm:$0xff]
    %v1168 = vld [vmem:[%s4 + $0x20] sm:$0xff]
    %v1169 = vld [vmem:[%s4 + $0x28] sm:$0xff]
    %v1170 = vld [vmem:[%s4 + $0x30] sm:$0xff]
    %v1171 = vld [vmem:[%s4 + $0x38] sm:$0xff]
    %v1172 = vld [vmem:[%s4 + $0x40] sm:$0xff]
    %v1173 = vld [vmem:[%s4 + $0x48] sm:$0xff]
    %v1174 = vld [vmem:[%s4 + $0x50] sm:$0xff]
    %v1175 = vld [vmem:[%s4 + $0x58] sm:$0xff]
    %v1176 = vld [vmem:[%s4 + $0x60] sm:$0xff]
    %v1177 = vld [vmem:[%s4 + $0x68] sm:$0xff]
    %v1178 = vld [vmem:[%s4 + $0x70] sm:$0xff]
    %v1179 = vld [vmem:[%s4 + $0x78] sm:$0xff]
    %v1180 = vld [vmem:[%s4 + $0x80] sm:$0xff]
    %v1181 = vld [vmem:[%s4 + $0x88] sm:$0xff]
    %v1182 = vld [vmem:[%s4 + $0x90] sm:$0xff]
    %v1183 = vld [vmem:[%s4 + $0x98] sm:$0xff]
    %v1184 = vld [vmem:[%s4 + $0xa0] sm:$0xff]
    %v1185 = vld [vmem:[%s4 + $0xa8] sm:$0xff]
    %v1186 = vld [vmem:[%s4 + $0xb0] sm:$0xff]
    %v1187 = vld [vmem:[%s4 + $0xb8] sm:$0xff]
    %v1188 = vld [vmem:[%s4 + $0xc0] sm:$0xff]
    %v1189 = vld [vmem:[%s4 + $0xc8] sm:$0xff]
    %v1190 = vld [vmem:[%s4 + $0xd0] sm:$0xff]
    %v1191 = vld [vmem:[%s4 + $0xd8] sm:$0xff]
    %v1192 = vld [vmem:[%s4 + $0xe0] sm:$0xff]
    %v1193 = vld [vmem:[%s4 + $0xe8] sm:$0xff]
    %v1194 = vld [vmem:[%s4 + $0xf0] sm:$0xff]
    %v1195 = vld [vmem:[%s4 + $0xf8] sm:$0xff]
    %v1196 = vadd.f32 %v716, %v717
    %1197 = vadd.xlane.f32.xlu0 %v1196
    %v1198 = vpop.xlane.xlu0 %1197
    %v1199 = vadd.f32 %v718, %v719
    %1200 = vadd.xlane.f32.xlu0 %v1199
    %v1201 = vpop.xlane.xlu0 %1200
    %v1202 = vadd.f32 %v720, %v721
    %1203 = vadd.xlane.f32.xlu0 %v1202
    %v1204 = vpop.xlane.xlu0 %1203
    %v1205 = vadd.f32 %v722, %v723
    %1206 = vadd.xlane.f32.xlu0 %v1205
    %v1207 = vpop.xlane.xlu0 %1206
    %v1208 = vadd.f32 %v724, %v725
    %1209 = vadd.xlane.f32.xlu0 %v1208
    %v1210 = vpop.xlane.xlu0 %1209
    %v1211 = vadd.f32 %v726, %v727
    %1212 = vadd.xlane.f32.xlu0 %v1211
    %v1213 = vpop.xlane.xlu0 %1212
    %v1214 = vadd.f32 %v728, %v729
    %1215 = vadd.xlane.f32.xlu0 %v1214
    %v1216 = vpop.xlane.xlu0 %1215
    %v1217 = vadd.f32 %v730, %v731
    %1218 = vadd.xlane.f32.xlu0 %v1217
    %v1219 = vpop.xlane.xlu0 %1218
    %v1220 = vadd.f32 %v732, %v733
    %1221 = vadd.xlane.f32.xlu0 %v1220
    %v1222 = vpop.xlane.xlu0 %1221
    %v1223 = vadd.f32 %v734, %v735
    %1224 = vadd.xlane.f32.xlu0 %v1223
    %v1225 = vpop.xlane.xlu0 %1224
    %v1226 = vadd.f32 %v736, %v737
    %1227 = vadd.xlane.f32.xlu0 %v1226
    %v1228 = vpop.xlane.xlu0 %1227
    %v1229 = vadd.f32 %v738, %v739
    %1230 = vadd.xlane.f32.xlu0 %v1229
    %v1231 = vpop.xlane.xlu0 %1230
    %v1232 = vadd.f32 %v740, %v741
    %1233 = vadd.xlane.f32.xlu0 %v1232
    %v1234 = vpop.xlane.xlu0 %1233
    %v1235 = vadd.f32 %v742, %v743
    %1236 = vadd.xlane.f32.xlu0 %v1235
    %v1237 = vpop.xlane.xlu0 %1236
    %v1238 = vadd.f32 %v744, %v745
    %1239 = vadd.xlane.f32.xlu0 %v1238
    %v1240 = vpop.xlane.xlu0 %1239
    %v1241 = vadd.f32 %v746, %v747
    %1242 = vadd.xlane.f32.xlu0 %v1241
    %v1243 = vpop.xlane.xlu0 %1242
    %v1244 = vadd.f32 %v748, %v749
    %1245 = vadd.xlane.f32.xlu0 %v1244
    %v1246 = vpop.xlane.xlu0 %1245
    %v1247 = vadd.f32 %v750, %v751
    %1248 = vadd.xlane.f32.xlu0 %v1247
    %v1249 = vpop.xlane.xlu0 %1248
    %v1250 = vadd.f32 %v752, %v753
    %1251 = vadd.xlane.f32.xlu0 %v1250
    %v1252 = vpop.xlane.xlu0 %1251
    %v1253 = vadd.f32 %v754, %v755
    %1254 = vadd.xlane.f32.xlu0 %v1253
    %v1255 = vpop.xlane.xlu0 %1254
    %v1256 = vadd.f32 %v756, %v757
    %1257 = vadd.xlane.f32.xlu0 %v1256
    %v1258 = vpop.xlane.xlu0 %1257
    %v1259 = vadd.f32 %v758, %v759
    %1260 = vadd.xlane.f32.xlu0 %v1259
    %v1261 = vpop.xlane.xlu0 %1260
    %v1262 = vadd.f32 %v760, %v761
    %1263 = vadd.xlane.f32.xlu0 %v1262
    %v1264 = vpop.xlane.xlu0 %1263
    %v1265 = vadd.f32 %v762, %v763
    %1266 = vadd.xlane.f32.xlu0 %v1265
    %v1267 = vpop.xlane.xlu0 %1266
    %v1268 = vadd.f32 %v764, %v765
    %1269 = vadd.xlane.f32.xlu0 %v1268
    %v1270 = vpop.xlane.xlu0 %1269
    %v1271 = vadd.f32 %v766, %v767
    %1272 = vadd.xlane.f32.xlu0 %v1271
    %v1273 = vpop.xlane.xlu0 %1272
    %v1274 = vadd.f32 %v768, %v769
    %1275 = vadd.xlane.f32.xlu0 %v1274
    %v1276 = vpop.xlane.xlu0 %1275
    %v1277 = vadd.f32 %v770, %v771
    %1278 = vadd.xlane.f32.xlu0 %v1277
    %v1279 = vpop.xlane.xlu0 %1278
    %v1280 = vadd.f32 %v772, %v773
    %1281 = vadd.xlane.f32.xlu0 %v1280
    %v1282 = vpop.xlane.xlu0 %1281
    %v1283 = vadd.f32 %v774, %v775
    %1284 = vadd.xlane.f32.xlu0 %v1283
    %v1285 = vpop.xlane.xlu0 %1284
    %v1286 = vadd.f32 %v776, %v777
    %1287 = vadd.xlane.f32.xlu0 %v1286
    %v1288 = vpop.xlane.xlu0 %1287
    %v1289 = vadd.f32 %v778, %v779
    %1290 = vadd.xlane.f32.xlu0 %v1289
    %v1291 = vpop.xlane.xlu0 %1290
    %v1292 = vadd.f32 %v1164, %v1198
    %v1293 = vadd.f32 %v1165, %v1201
    %v1294 = vadd.f32 %v1166, %v1204
    %v1295 = vadd.f32 %v1167, %v1207
    %v1296 = vadd.f32 %v1168, %v1210
    %v1297 = vadd.f32 %v1169, %v1213
    %v1298 = vadd.f32 %v1170, %v1216
    %v1299 = vadd.f32 %v1171, %v1219
    %v1300 = vadd.f32 %v1172, %v1222
    %v1301 = vadd.f32 %v1173, %v1225
    %v1302 = vadd.f32 %v1174, %v1228
    %v1303 = vadd.f32 %v1175, %v1231
    %v1304 = vadd.f32 %v1176, %v1234
    %v1305 = vadd.f32 %v1177, %v1237
    %v1306 = vadd.f32 %v1178, %v1240
    %v1307 = vadd.f32 %v1179, %v1243
    %v1308 = vadd.f32 %v1180, %v1246
    %v1309 = vadd.f32 %v1181, %v1249
    %v1310 = vadd.f32 %v1182, %v1252
    %v1311 = vadd.f32 %v1183, %v1255
    %v1312 = vadd.f32 %v1184, %v1258
    %v1313 = vadd.f32 %v1185, %v1261
    %v1314 = vadd.f32 %v1186, %v1264
    %v1315 = vadd.f32 %v1187, %v1267
    %v1316 = vadd.f32 %v1188, %v1270
    %v1317 = vadd.f32 %v1189, %v1273
    %v1318 = vadd.f32 %v1190, %v1276
    %v1319 = vadd.f32 %v1191, %v1279
    %v1320 = vadd.f32 %v1192, %v1282
    %v1321 = vadd.f32 %v1193, %v1285
    %v1322 = vadd.f32 %v1194, %v1288
    %v1323 = vadd.f32 %v1195, %v1291
    %vm1324 = vcmask 7168
    %1325 = vst.msk [vmem:[%s4] sm:$0xff] %vm1324, %v1292
    %1326 = vst.msk [vmem:[%s4 + $0x8] sm:$0xff] %vm1324, %v1293
    %1327 = vst.msk [vmem:[%s4 + $0x10] sm:$0xff] %vm1324, %v1294
    %1328 = vst.msk [vmem:[%s4 + $0x18] sm:$0xff] %vm1324, %v1295
    %1329 = vst.msk [vmem:[%s4 + $0x20] sm:$0xff] %vm1324, %v1296
    %1330 = vst.msk [vmem:[%s4 + $0x28] sm:$0xff] %vm1324, %v1297
    %1331 = vst.msk [vmem:[%s4 + $0x30] sm:$0xff] %vm1324, %v1298
    %1332 = vst.msk [vmem:[%s4 + $0x38] sm:$0xff] %vm1324, %v1299
    %1333 = vst.msk [vmem:[%s4 + $0x40] sm:$0xff] %vm1324, %v1300
    %1334 = vst.msk [vmem:[%s4 + $0x48] sm:$0xff] %vm1324, %v1301
    %1335 = vst.msk [vmem:[%s4 + $0x50] sm:$0xff] %vm1324, %v1302
    %1336 = vst.msk [vmem:[%s4 + $0x58] sm:$0xff] %vm1324, %v1303
    %1337 = vst.msk [vmem:[%s4 + $0x60] sm:$0xff] %vm1324, %v1304
    %1338 = vst.msk [vmem:[%s4 + $0x68] sm:$0xff] %vm1324, %v1305
    %1339 = vst.msk [vmem:[%s4 + $0x70] sm:$0xff] %vm1324, %v1306
    %1340 = vst.msk [vmem:[%s4 + $0x78] sm:$0xff] %vm1324, %v1307
    %1341 = vst.msk [vmem:[%s4 + $0x80] sm:$0xff] %vm1324, %v1308
    %1342 = vst.msk [vmem:[%s4 + $0x88] sm:$0xff] %vm1324, %v1309
    %1343 = vst.msk [vmem:[%s4 + $0x90] sm:$0xff] %vm1324, %v1310
    %1344 = vst.msk [vmem:[%s4 + $0x98] sm:$0xff] %vm1324, %v1311
    %1345 = vst.msk [vmem:[%s4 + $0xa0] sm:$0xff] %vm1324, %v1312
    %1346 = vst.msk [vmem:[%s4 + $0xa8] sm:$0xff] %vm1324, %v1313
    %1347 = vst.msk [vmem:[%s4 + $0xb0] sm:$0xff] %vm1324, %v1314
    %1348 = vst.msk [vmem:[%s4 + $0xb8] sm:$0xff] %vm1324, %v1315
    %1349 = vst.msk [vmem:[%s4 + $0xc0] sm:$0xff] %vm1324, %v1316
    %1350 = vst.msk [vmem:[%s4 + $0xc8] sm:$0xff] %vm1324, %v1317
    %1351 = vst.msk [vmem:[%s4 + $0xd0] sm:$0xff] %vm1324, %v1318
    %1352 = vst.msk [vmem:[%s4 + $0xd8] sm:$0xff] %vm1324, %v1319
    %1353 = vst.msk [vmem:[%s4 + $0xe0] sm:$0xff] %vm1324, %v1320
    %1354 = vst.msk [vmem:[%s4 + $0xe8] sm:$0xff] %vm1324, %v1321
    %1355 = vst.msk [vmem:[%s4 + $0xf0] sm:$0xff] %vm1324, %v1322
    %1356 = vst.msk [vmem:[%s4 + $0xf8] sm:$0xff] %vm1324, %v1323
    %v1357 = vld [vmem:[%s5] sm:$0xff]
    %v1358 = vld [vmem:[%s5 + $0x8] sm:$0xff]
    %v1359 = vld [vmem:[%s5 + $0x10] sm:$0xff]
    %v1360 = vld [vmem:[%s5 + $0x18] sm:$0xff]
    %v1361 = vld [vmem:[%s5 + $0x20] sm:$0xff]
    %v1362 = vld [vmem:[%s5 + $0x28] sm:$0xff]
    %v1363 = vld [vmem:[%s5 + $0x30] sm:$0xff]
    %v1364 = vld [vmem:[%s5 + $0x38] sm:$0xff]
    %v1365 = vld [vmem:[%s5 + $0x40] sm:$0xff]
    %v1366 = vld [vmem:[%s5 + $0x48] sm:$0xff]
    %v1367 = vld [vmem:[%s5 + $0x50] sm:$0xff]
    %v1368 = vld [vmem:[%s5 + $0x58] sm:$0xff]
    %v1369 = vld [vmem:[%s5 + $0x60] sm:$0xff]
    %v1370 = vld [vmem:[%s5 + $0x68] sm:$0xff]
    %v1371 = vld [vmem:[%s5 + $0x70] sm:$0xff]
    %v1372 = vld [vmem:[%s5 + $0x78] sm:$0xff]
    %v1373 = vld [vmem:[%s5 + $0x80] sm:$0xff]
    %v1374 = vld [vmem:[%s5 + $0x88] sm:$0xff]
    %v1375 = vld [vmem:[%s5 + $0x90] sm:$0xff]
    %v1376 = vld [vmem:[%s5 + $0x98] sm:$0xff]
    %v1377 = vld [vmem:[%s5 + $0xa0] sm:$0xff]
    %v1378 = vld [vmem:[%s5 + $0xa8] sm:$0xff]
    %v1379 = vld [vmem:[%s5 + $0xb0] sm:$0xff]
    %v1380 = vld [vmem:[%s5 + $0xb8] sm:$0xff]
    %v1381 = vld [vmem:[%s5 + $0xc0] sm:$0xff]
    %v1382 = vld [vmem:[%s5 + $0xc8] sm:$0xff]
    %v1383 = vld [vmem:[%s5 + $0xd0] sm:$0xff]
    %v1384 = vld [vmem:[%s5 + $0xd8] sm:$0xff]
    %v1385 = vld [vmem:[%s5 + $0xe0] sm:$0xff]
    %v1386 = vld [vmem:[%s5 + $0xe8] sm:$0xff]
    %v1387 = vld [vmem:[%s5 + $0xf0] sm:$0xff]
    %v1388 = vld [vmem:[%s5 + $0xf8] sm:$0xff]
    %v1389 = vadd.f32 %v1100, %v1101
    %1390 = vadd.xlane.f32.xlu0 %v1389
    %v1391 = vpop.xlane.xlu0 %1390
    %v1392 = vadd.f32 %v1102, %v1103
    %1393 = vadd.xlane.f32.xlu0 %v1392
    %v1394 = vpop.xlane.xlu0 %1393
    %v1395 = vadd.f32 %v1104, %v1105
    %1396 = vadd.xlane.f32.xlu0 %v1395
    %v1397 = vpop.xlane.xlu0 %1396
    %v1398 = vadd.f32 %v1106, %v1107
    %1399 = vadd.xlane.f32.xlu0 %v1398
    %v1400 = vpop.xlane.xlu0 %1399
    %v1401 = vadd.f32 %v1108, %v1109
    %1402 = vadd.xlane.f32.xlu0 %v1401
    %v1403 = vpop.xlane.xlu0 %1402
    %v1404 = vadd.f32 %v1110, %v1111
    %1405 = vadd.xlane.f32.xlu0 %v1404
    %v1406 = vpop.xlane.xlu0 %1405
    %v1407 = vadd.f32 %v1112, %v1113
    %1408 = vadd.xlane.f32.xlu0 %v1407
    %v1409 = vpop.xlane.xlu0 %1408
    %v1410 = vadd.f32 %v1114, %v1115
    %1411 = vadd.xlane.f32.xlu0 %v1410
    %v1412 = vpop.xlane.xlu0 %1411
    %v1413 = vadd.f32 %v1116, %v1117
    %1414 = vadd.xlane.f32.xlu0 %v1413
    %v1415 = vpop.xlane.xlu0 %1414
    %v1416 = vadd.f32 %v1118, %v1119
    %1417 = vadd.xlane.f32.xlu0 %v1416
    %v1418 = vpop.xlane.xlu0 %1417
    %v1419 = vadd.f32 %v1120, %v1121
    %1420 = vadd.xlane.f32.xlu0 %v1419
    %v1421 = vpop.xlane.xlu0 %1420
    %v1422 = vadd.f32 %v1122, %v1123
    %1423 = vadd.xlane.f32.xlu0 %v1422
    %v1424 = vpop.xlane.xlu0 %1423
    %v1425 = vadd.f32 %v1124, %v1125
    %1426 = vadd.xlane.f32.xlu0 %v1425
    %v1427 = vpop.xlane.xlu0 %1426
    %v1428 = vadd.f32 %v1126, %v1127
    %1429 = vadd.xlane.f32.xlu0 %v1428
    %v1430 = vpop.xlane.xlu0 %1429
    %v1431 = vadd.f32 %v1128, %v1129
    %1432 = vadd.xlane.f32.xlu0 %v1431
    %v1433 = vpop.xlane.xlu0 %1432
    %v1434 = vadd.f32 %v1130, %v1131
    %1435 = vadd.xlane.f32.xlu0 %v1434
    %v1436 = vpop.xlane.xlu0 %1435
    %v1437 = vadd.f32 %v1132, %v1133
    %1438 = vadd.xlane.f32.xlu0 %v1437
    %v1439 = vpop.xlane.xlu0 %1438
    %v1440 = vadd.f32 %v1134, %v1135
    %1441 = vadd.xlane.f32.xlu0 %v1440
    %v1442 = vpop.xlane.xlu0 %1441
    %v1443 = vadd.f32 %v1136, %v1137
    %1444 = vadd.xlane.f32.xlu0 %v1443
    %v1445 = vpop.xlane.xlu0 %1444
    %v1446 = vadd.f32 %v1138, %v1139
    %1447 = vadd.xlane.f32.xlu0 %v1446
    %v1448 = vpop.xlane.xlu0 %1447
    %v1449 = vadd.f32 %v1140, %v1141
    %1450 = vadd.xlane.f32.xlu0 %v1449
    %v1451 = vpop.xlane.xlu0 %1450
    %v1452 = vadd.f32 %v1142, %v1143
    %1453 = vadd.xlane.f32.xlu0 %v1452
    %v1454 = vpop.xlane.xlu0 %1453
    %v1455 = vadd.f32 %v1144, %v1145
    %1456 = vadd.xlane.f32.xlu0 %v1455
    %v1457 = vpop.xlane.xlu0 %1456
    %v1458 = vadd.f32 %v1146, %v1147
    %1459 = vadd.xlane.f32.xlu0 %v1458
    %v1460 = vpop.xlane.xlu0 %1459
    %v1461 = vadd.f32 %v1148, %v1149
    %1462 = vadd.xlane.f32.xlu0 %v1461
    %v1463 = vpop.xlane.xlu0 %1462
    %v1464 = vadd.f32 %v1150, %v1151
    %1465 = vadd.xlane.f32.xlu0 %v1464
    %v1466 = vpop.xlane.xlu0 %1465
    %v1467 = vadd.f32 %v1152, %v1153
    %1468 = vadd.xlane.f32.xlu0 %v1467
    %v1469 = vpop.xlane.xlu0 %1468
    %v1470 = vadd.f32 %v1154, %v1155
    %1471 = vadd.xlane.f32.xlu0 %v1470
    %v1472 = vpop.xlane.xlu0 %1471
    %v1473 = vadd.f32 %v1156, %v1157
    %1474 = vadd.xlane.f32.xlu0 %v1473
    %v1475 = vpop.xlane.xlu0 %1474
    %v1476 = vadd.f32 %v1158, %v1159
    %1477 = vadd.xlane.f32.xlu0 %v1476
    %v1478 = vpop.xlane.xlu0 %1477
    %v1479 = vadd.f32 %v1160, %v1161
    %1480 = vadd.xlane.f32.xlu0 %v1479
    %v1481 = vpop.xlane.xlu0 %1480
    %v1482 = vadd.f32 %v1162, %v1163
    %1483 = vadd.xlane.f32.xlu0 %v1482
    %v1484 = vpop.xlane.xlu0 %1483
    %v1485 = vadd.f32 %v1357, %v1391
    %v1486 = vadd.f32 %v1358, %v1394
    %v1487 = vadd.f32 %v1359, %v1397
    %v1488 = vadd.f32 %v1360, %v1400
    %v1489 = vadd.f32 %v1361, %v1403
    %v1490 = vadd.f32 %v1362, %v1406
    %v1491 = vadd.f32 %v1363, %v1409
    %v1492 = vadd.f32 %v1364, %v1412
    %v1493 = vadd.f32 %v1365, %v1415
    %v1494 = vadd.f32 %v1366, %v1418
    %v1495 = vadd.f32 %v1367, %v1421
    %v1496 = vadd.f32 %v1368, %v1424
    %v1497 = vadd.f32 %v1369, %v1427
    %v1498 = vadd.f32 %v1370, %v1430
    %v1499 = vadd.f32 %v1371, %v1433
    %v1500 = vadd.f32 %v1372, %v1436
    %v1501 = vadd.f32 %v1373, %v1439
    %v1502 = vadd.f32 %v1374, %v1442
    %v1503 = vadd.f32 %v1375, %v1445
    %v1504 = vadd.f32 %v1376, %v1448
    %v1505 = vadd.f32 %v1377, %v1451
    %v1506 = vadd.f32 %v1378, %v1454
    %v1507 = vadd.f32 %v1379, %v1457
    %v1508 = vadd.f32 %v1380, %v1460
    %v1509 = vadd.f32 %v1381, %v1463
    %v1510 = vadd.f32 %v1382, %v1466
    %v1511 = vadd.f32 %v1383, %v1469
    %v1512 = vadd.f32 %v1384, %v1472
    %v1513 = vadd.f32 %v1385, %v1475
    %v1514 = vadd.f32 %v1386, %v1478
    %v1515 = vadd.f32 %v1387, %v1481
    %v1516 = vadd.f32 %v1388, %v1484
    %1517 = vst.msk [vmem:[%s5] sm:$0xff] %vm1324, %v1485
    %1518 = vst.msk [vmem:[%s5 + $0x8] sm:$0xff] %vm1324, %v1486
    %1519 = vst.msk [vmem:[%s5 + $0x10] sm:$0xff] %vm1324, %v1487
    %1520 = vst.msk [vmem:[%s5 + $0x18] sm:$0xff] %vm1324, %v1488
    %1521 = vst.msk [vmem:[%s5 + $0x20] sm:$0xff] %vm1324, %v1489
    %1522 = vst.msk [vmem:[%s5 + $0x28] sm:$0xff] %vm1324, %v1490
    %1523 = vst.msk [vmem:[%s5 + $0x30] sm:$0xff] %vm1324, %v1491
    %1524 = vst.msk [vmem:[%s5 + $0x38] sm:$0xff] %vm1324, %v1492
    %1525 = vst.msk [vmem:[%s5 + $0x40] sm:$0xff] %vm1324, %v1493
    %1526 = vst.msk [vmem:[%s5 + $0x48] sm:$0xff] %vm1324, %v1494
    %1527 = vst.msk [vmem:[%s5 + $0x50] sm:$0xff] %vm1324, %v1495
    %1528 = vst.msk [vmem:[%s5 + $0x58] sm:$0xff] %vm1324, %v1496
    %1529 = vst.msk [vmem:[%s5 + $0x60] sm:$0xff] %vm1324, %v1497
    %1530 = vst.msk [vmem:[%s5 + $0x68] sm:$0xff] %vm1324, %v1498
    %1531 = vst.msk [vmem:[%s5 + $0x70] sm:$0xff] %vm1324, %v1499
    %1532 = vst.msk [vmem:[%s5 + $0x78] sm:$0xff] %vm1324, %v1500
    %1533 = vst.msk [vmem:[%s5 + $0x80] sm:$0xff] %vm1324, %v1501
    %1534 = vst.msk [vmem:[%s5 + $0x88] sm:$0xff] %vm1324, %v1502
    %1535 = vst.msk [vmem:[%s5 + $0x90] sm:$0xff] %vm1324, %v1503
    %1536 = vst.msk [vmem:[%s5 + $0x98] sm:$0xff] %vm1324, %v1504
    %1537 = vst.msk [vmem:[%s5 + $0xa0] sm:$0xff] %vm1324, %v1505
    %1538 = vst.msk [vmem:[%s5 + $0xa8] sm:$0xff] %vm1324, %v1506
    %1539 = vst.msk [vmem:[%s5 + $0xb0] sm:$0xff] %vm1324, %v1507
    %1540 = vst.msk [vmem:[%s5 + $0xb8] sm:$0xff] %vm1324, %v1508
    %1541 = vst.msk [vmem:[%s5 + $0xc0] sm:$0xff] %vm1324, %v1509
    %1542 = vst.msk [vmem:[%s5 + $0xc8] sm:$0xff] %vm1324, %v1510
    %1543 = vst.msk [vmem:[%s5 + $0xd0] sm:$0xff] %vm1324, %v1511
    %1544 = vst.msk [vmem:[%s5 + $0xd8] sm:$0xff] %vm1324, %v1512
    %1545 = vst.msk [vmem:[%s5 + $0xe0] sm:$0xff] %vm1324, %v1513
    %1546 = vst.msk [vmem:[%s5 + $0xe8] sm:$0xff] %vm1324, %v1514
    %1547 = vst.msk [vmem:[%s5 + $0xf0] sm:$0xff] %vm1324, %v1515
    %1548 = vst.msk [vmem:[%s5 + $0xf8] sm:$0xff] %vm1324, %v1516
    // Predicated region
    $region30: #{_backsub_chain.1} parent=1 // pred_check
      _
    $region31: #{_backsub_chain.1} parent=1 // pred_check_branch
      %1550 = sbr.rel (0) target = $region33
    $region32: #{_backsub_chain.1} parent=1 // pred_region
      _
    $region33: #{_backsub_chain.1} parent=1 // pred_fallthru
      _
    // Predicated region
    $region34: #{_backsub_chain.1} parent=1 // pred_check
      _
    $region35: #{_backsub_chain.1} parent=1 // pred_check_branch
      %1552 = sbr.rel (0) target = $region37
    $region36: #{_backsub_chain.1} parent=1 // pred_region
      _
    $region37: #{_backsub_chain.1} parent=1 // pred_fallthru
      _
    // Predicated region
    $region38: #{_backsub_chain.1} parent=1 // pred_check
      _
    $region39: #{_backsub_chain.1} parent=1 // pred_check_branch
      %1554 = sbr.rel (0) target = $region41
    $region40: #{_backsub_chain.1} parent=1 // pred_region
      _
    $region41: #{_backsub_chain.1} parent=1 // pred_fallthru
      _
    // Predicated region
    $region42: #{_backsub_chain.1} parent=1 // pred_check
      _
    $region43: #{_backsub_chain.1} parent=1 // pred_check_branch
      %1556 = sbr.rel (0) target = $region45
    $region44: #{_backsub_chain.1} parent=1 // pred_region
      _
    $region45: #{_backsub_chain.1} parent=1 // pred_fallthru
      _
    %1557 = vsyncpa [#allocation3], 1
    %1558 = vsyncpa [#allocation5], 1

</llo_original>
